<compile_context>
chip_gen: v6e
topology: v6e:2x2x1
jax: 0.10.0
libtpu: 0.0.40
codegen_flags: <defaults>
</compile_context>

<pallas_src>
import jax
import jax.numpy as jnp
import numpy as np
from jax.experimental import pallas as pl
from jax.experimental.pallas import tpu as pltpu


def sun_kernel(adj_ref, xwn_ref, xma_ref, wra_ref, bias_ref, out_ref):
    """One (row-tile i, k-tile k) grid step.

    out[i] (f32, revisited across k) accumulates A[i, k] @ (x @ Wn)[k].
    At k == 0 it is initialised with the tiny root path + broadcast bias:
        [x*mask, mask] @ [Wr ; br] == mask * (x @ Wr + br)
        bias = global_mlp(mean(x)) + b_nonroot   (one row, broadcast)
    """
    @pl.when(pl.program_id(1) == 0)
    def _init():
        out_ref[...] = (
            jnp.dot(xma_ref[...], wra_ref[...],
                    preferred_element_type=jnp.float32)
            + bias_ref[...]
        )

    adj = adj_ref[...]                      # (TM, TK) int8 / bf16 from HBM
    if adj.dtype != jnp.bfloat16:
        adj = adj.astype(jnp.bfloat16)      # VPU upcast, hides under the DMA
    # Pure-bf16 MXU matmul, f32 accumulate into the resident output block.
    out_ref[...] += jnp.dot(adj, xwn_ref[...],
                            preferred_element_type=jnp.float32)


def _round_up(v, m):
    return (v + m - 1) // m * m


def _pick_tile(n_pad, target, quantum=128):
    """Largest multiple of `quantum` that divides n_pad and is <= target."""
    t = max(quantum, (min(target, n_pad) // quantum) * quantum)
    while t > quantum and n_pad % t:
        t -= quantum
    return t


def _tpu_defaults():
    """(tm, tk, vmem_cap) chosen per TPU generation from physical VMEM size."""
    vmem_phys = 64 << 20                       # conservative default (v7x / TC)
    try:
        vmem_phys = int(getattr(pltpu.get_tpu_info(), "vmem_capacity_bytes",
                                vmem_phys))
    except Exception:
        pass
    if vmem_phys >= (100 << 20):               # v5e / v6e: 128 MiB VMEM
        return 1024, 2048, (104 << 20)
    return 1024, 1024, (40 << 20)              # v7x: 64 MiB per TensorCore


def sun_layer_forward(x, edge_index, subgraph_masks, params, *,
                      tm=None, tk=None, adj_dtype=jnp.int8):
    """SUNLayer forward.

    x: [N, Cin] f32, edge_index: [2, E] int32, subgraph_masks: [N] bool.
    params = (wr, br, wn, bn, wg, bg); weights are [Cin, Cout] (transposed vs
    PyTorch nn.Linear), biases [1, Cout].
    adj_dtype: HBM storage dtype of the dense adjacency (int8 exact for edge
    multiplicities <= 127, bf16 for <= 256).
    """
    n, c_in = x.shape
    wr, br, wn, bn, wg, bg = params
    c_out = wr.shape[1]

    # --- per-generation tiling / limits (static python ints) -----------------
    tm_d, tk_d, vmem_cap = _tpu_defaults()
    tm = tm_d if tm is None else tm
    tk = tk_d if tk is None else tk

    lane = 128
    c_out_p = _round_up(c_out, lane)           # lane-dense output / xwn
    n_pad = _round_up(n, lane)                 # rows == adjacency columns
    tm_eff = _pick_tile(n_pad, tm)
    tk_eff = _pick_tile(n_pad, tk)
    grid = (n_pad // tm_eff, n_pad // tk_eff)  # reduction (k) axis last

    # --- dense adjacency, built directly in its narrow storage dtype ---------
    # (to_dense_adj semantics: adj[src, dst] += 1; counts must fit adj_dtype)
    adj = jnp.zeros((n_pad, n_pad), adj_dtype)
    adj = adj.at[edge_index[0], edge_index[1]].add(1)

    # --- small per-node operands ----------------------------------------------
    mask_f = subgraph_masks.astype(jnp.float32)[:, None]             # [N, 1]
    xma = jnp.concatenate([x * mask_f, mask_f], axis=1)              # [N, Cin+1]
    xma_p = jnp.zeros((n_pad, c_in + 1), jnp.float32).at[:n].set(xma)

    # Wn fused into the adjacency matmul:  A @ (x @ Wn)  ==  (A @ x) @ Wn.
    xwn = jnp.zeros((n_pad, c_out_p), jnp.float32).at[:n, :c_out].set(x @ wn)
    xwn = xwn.astype(jnp.bfloat16)                                   # [N_pad, Cout_p]

    def pad_cols(w):
        return jnp.zeros((w.shape[0], c_out_p), jnp.float32).at[:, :c_out].set(w)

    w_ra = pad_cols(jnp.concatenate([wr, br], axis=0))               # [Cin+1, Cout_p]

    # global_mlp(mean(x)) + non-root bias: one f32 row, computed once (hoisted).
    glob = jnp.mean(x, axis=0, keepdims=True) @ wg + bg              # [1, Cout]
    bias_tot = pad_cols(glob + bn)                                   # [1, Cout_p]

    # --- honest VMEM budget ----------------------------------------------------
    adj_bytes = jnp.dtype(adj_dtype).itemsize
    vmem_budget = (
        2 * tm_eff * tk_eff * adj_bytes        # adj tile, double-buffered
        + tm_eff * tk_eff * 2                  # in-kernel bf16 upcast temporary
        + 2 * tk_eff * c_out_p * 2             # x@Wn tile (bf16), double-buffered
        + 2 * tm_eff * (c_in + 1) * 4          # [x*mask, mask] tile
        + 2 * tm_eff * c_out_p * 4             # revisited f32 output/accumulator
        + 2 * (c_in + 1) * c_out_p * 4         # [Wr; br] (Pallas double-buffers it)
        + 2 * 8 * c_out_p * 4                  # bias row
        + (8 << 20)                            # compiler / internal scratch headroom
    )
    vmem_limit = int(min(max(vmem_budget, 32 << 20), vmem_cap))

    cost = pl.CostEstimate(
        flops=2 * n_pad * n_pad * c_out_p + 2 * n_pad * (c_in + 1) * c_out_p,
        transcendentals=0,
        bytes_accessed=(n_pad * n_pad * adj_bytes           # adjacency stream
                        + grid[0] * n_pad * c_out_p * 2     # xwn, re-read per row tile
                        + n_pad * (c_in + 1) * 4
                        + n_pad * c_out_p * 4
                        + (c_in + 2) * c_out_p * 4),
    )

    out = pl.pallas_call(
        sun_kernel,
        out_shape=jax.ShapeDtypeStruct((n_pad, c_out_p), jnp.float32),
        grid=grid,
        in_specs=[
            pl.BlockSpec((tm_eff, tk_eff), lambda i, k: (i, k)),      # adj tile
            pl.BlockSpec((tk_eff, c_out_p), lambda i, k: (k, 0)),     # x @ Wn tile
            pl.BlockSpec((tm_eff, c_in + 1), lambda i, k: (i, 0)),    # [x*mask, mask]
            pl.BlockSpec((c_in + 1, c_out_p), lambda i, k: (0, 0)),   # [Wr; br]
            pl.BlockSpec((1, c_out_p), lambda i, k: (0, 0)),          # glob + bn
        ],
        out_specs=pl.BlockSpec((tm_eff, c_out_p), lambda i, k: (i, 0)),
        compiler_params=pltpu.CompilerParams(
            dimension_semantics=("parallel", "arbitrary"),  # rows megacore-shard
            vmem_limit_bytes=vmem_limit,
        ),
        cost_estimate=cost,
    )(adj, xwn, xma_p, w_ra, bias_tot)

    return out[:n, :c_out]


def init_linear(key, c_in, c_out):
    """Deterministic init mirroring nn.Linear (uniform +/- 1/sqrt(c_in))."""
    kw, kb = jax.random.split(key)
    bound = 1.0 / np.sqrt(c_in)
    w = jax.random.uniform(kw, (c_in, c_out), jnp.float32, -bound, bound)
    b = jax.random.uniform(kb, (1, c_out), jnp.float32, -bound, bound)
    return w, b


def reference_forward(x, edge_index, subgraph_masks, params):
    """Pure-JAX f32 reference of the PyTorch forward."""
    wr, br, wn, bn, wg, bg = params
    n = x.shape[0]
    adj = jnp.zeros((n, n), jnp.float32).at[edge_index[0], edge_index[1]].add(1.0)
    local = adj @ x
    glob = jnp.mean(x, axis=0, keepdims=True) @ wg + bg
    glob = jnp.broadcast_to(glob, (n, glob.shape[1]))
    root = (x @ wr + br) * subgraph_masks.astype(jnp.float32)[:, None]
    non_root = local @ wn + bn
    return root + non_root + glob


if __name__ == "__main__":
    # N not a multiple of the tile size and C_OUT not a multiple of 128 so that
    # both padding paths are exercised.
    N, C_IN, C_OUT = 200, 32, 48

    key = jax.random.PRNGKey(0)
    kx, kr, kn, kg = jax.random.split(key, 4)

    x = jax.random.normal(kx, (N, C_IN), jnp.float32)

    # deterministic edge list: a ring plus a few chords (no duplicate edges)
    src = np.array(list(range(N)) + [0, 5, 17, 42, 99, 123], dtype=np.int32)
    dst = np.array([(i + 1) % N for i in range(N)] + [10, 100, 3, 7, 150, 45],
                   dtype=np.int32)
    edge_index = jnp.stack([jnp.asarray(src), jnp.asarray(dst)], axis=0)

    # every third node is a subgraph root
    subgraph_masks = jnp.asarray(np.arange(N) % 3 == 0)

    wr, br = init_linear(kr, C_IN, C_OUT)
    wn, bn = init_linear(kn, C_IN, C_OUT)
    wg, bg = init_linear(kg, C_IN, C_OUT)
    params = (wr, br, wn, bn, wg, bg)

    ref = jax.block_until_ready(
        reference_forward(x, edge_index, subgraph_masks, params))

    fwd = jax.jit(sun_layer_forward, static_argnames=("tm", "tk", "adj_dtype"))

    # Auto (per-generation) tiles with int8 adjacency; fall back to bf16
    # adjacency if this Mosaic build cannot lower the int8 path.
    adj_dtype = jnp.int8
    try:
        out = jax.block_until_ready(
            fwd(x, edge_index, subgraph_masks, params, adj_dtype=adj_dtype))
    except Exception:
        adj_dtype = jnp.bfloat16
        out = jax.block_until_ready(
            fwd(x, edge_index, subgraph_masks, params, adj_dtype=adj_dtype))
    # bf16 x@Wn operand -> ~0.2% relative error on the non-root term.
    np.testing.assert_allclose(np.asarray(out), np.asarray(ref),
                               rtol=2e-2, atol=2e-2)

    # Small explicit tiles: exercises the multi-step K reduction (accumulator
    # revisit) and the row-parallel pipeline on the same graph (grid = (2, 2)).
    out2 = jax.block_until_ready(
        fwd(x, edge_index, subgraph_masks, params, tm=128, tk=128,
            adj_dtype=adj_dtype))
    np.testing.assert_allclose(np.asarray(out2), np.asarray(ref),
                               rtol=2e-2, atol=2e-2)

    print("KERNEL_OK")
</pallas_src>

<mosaic_0001>
module attributes {stable_mosaic.version = 11 : i64} {
  func.func @sun_kernel(%arg0: i32, %arg1: i32, %arg2: memref<256x256xi8, #tpu.memory_space<vmem>>, %arg3: memref<256x128xbf16, #tpu.memory_space<vmem>>, %arg4: memref<256x33xf32, #tpu.memory_space<vmem>>, %arg5: memref<33x128xf32, #tpu.memory_space<vmem>>, %arg6: memref<1x128xf32, #tpu.memory_space<vmem>>, %arg7: memref<256x128xf32, #tpu.memory_space<vmem>>) attributes {dimension_semantics = [#tpu.dimension_semantics<parallel>, #tpu.dimension_semantics<arbitrary>], iteration_bounds = array<i64: 1, 1>, scalar_prefetch = 0 : i64, scratch_operands = 0 : i64, tpu.core_type = #tpu.core_type<tc>, window_params = [{transform_indices = @transform_0, window_bounds = array<i64: 256, 256>}, {transform_indices = @transform_1, window_bounds = array<i64: 256, 128>}, {transform_indices = @transform_2, window_bounds = array<i64: 256, 33>}, {pipeline_mode = #tpu.pipeline_mode<synchronous>, transform_indices = @transform_3, window_bounds = array<i64: 33, 128>}, {pipeline_mode = #tpu.pipeline_mode<synchronous>, transform_indices = @transform_4, window_bounds = array<i64: 1, 128>}, {transform_indices = @transform_5, window_bounds = array<i64: 256, 128>}]} {
    %c0_i32 = arith.constant 0 : i32
    %0 = arith.cmpi eq, %arg1, %c0_i32 : i32
    %1 = arith.extui %0 : i1 to i32
    %c0_i32_0 = arith.constant 0 : i32
    %2 = arith.cmpi ne, %1, %c0_i32_0 : i32
    scf.if %2 {
      %c0_8 = arith.constant 0 : index
      %c0_9 = arith.constant 0 : index
      %10 = vector.load %arg4[%c0_8, %c0_9] : memref<256x33xf32, #tpu.memory_space<vmem>>, vector<256x33xf32>
      %c0_10 = arith.constant 0 : index
      %c0_11 = arith.constant 0 : index
      %11 = vector.load %arg5[%c0_10, %c0_11] : memref<33x128xf32, #tpu.memory_space<vmem>>, vector<33x128xf32>
      %cst_12 = arith.constant dense<0.000000e+00> : vector<256x128xf32>
      %12 = tpu.matmul %10, %11, %cst_12 {dimension_numbers = #tpu.dot_dimension_numbers<[1], [0], [0], [1], [0, 0, 1, 1], [], []>} : vector<256x33xf32>, vector<33x128xf32>, vector<256x128xf32> -> vector<256x128xf32>
      %c0_13 = arith.constant 0 : index
      %c0_14 = arith.constant 0 : index
      %13 = vector.load %arg6[%c0_13, %c0_14] : memref<1x128xf32, #tpu.memory_space<vmem>>, vector<1x128xf32>
      %14 = vector.broadcast %13 : vector<1x128xf32> to vector<256x128xf32>
      %15 = arith.addf %12, %14 : vector<256x128xf32>
      %c0_15 = arith.constant 0 : index
      %c0_16 = arith.constant 0 : index
      %16 = vector.load %arg7[%c0_15, %c0_16] : memref<256x128xf32, #tpu.memory_space<vmem>>, vector<256x128xf32>
      tpu.vector_store %arg7[%c0_15, %c0_16], %15 {strides = array<i32>} : memref<256x128xf32, #tpu.memory_space<vmem>>, vector<256x128xf32>,
    } else {
    }
    %c0 = arith.constant 0 : index
    %c0_1 = arith.constant 0 : index
    %3 = vector.load %arg2[%c0, %c0_1] : memref<256x256xi8, #tpu.memory_space<vmem>>, vector<256x256xi8>
    %4 = arith.sitofp %3 : vector<256x256xi8> to vector<256x256xbf16>
    %c0_2 = arith.constant 0 : index
    %c0_3 = arith.constant 0 : index
    %5 = vector.load %arg7[%c0_2, %c0_3] : memref<256x128xf32, #tpu.memory_space<vmem>>, vector<256x128xf32>
    %c0_4 = arith.constant 0 : index
    %c0_5 = arith.constant 0 : index
    %6 = vector.load %arg3[%c0_4, %c0_5] : memref<256x128xbf16, #tpu.memory_space<vmem>>, vector<256x128xbf16>
    %cst = arith.constant dense<0.000000e+00> : vector<256x128xf32>
    %7 = tpu.matmul %4, %6, %cst {dimension_numbers = #tpu.dot_dimension_numbers<[1], [0], [0], [1], [0, 0, 1, 1], [], []>} : vector<256x256xbf16>, vector<256x128xbf16>, vector<256x128xf32> -> vector<256x128xf32>
    %8 = arith.addf %5, %7 : vector<256x128xf32>
    %c0_6 = arith.constant 0 : index
    %c0_7 = arith.constant 0 : index
    %9 = vector.load %arg7[%c0_6, %c0_7] : memref<256x128xf32, #tpu.memory_space<vmem>>, vector<256x128xf32>
    tpu.vector_store %arg7[%c0_6, %c0_7], %8 {strides = array<i32>} : memref<256x128xf32, #tpu.memory_space<vmem>>, vector<256x128xf32>,
    return
  }
  func.func @transform_0(%arg0: i32, %arg1: i32) -> (i32, i32) {
    %c0_i32 = arith.constant 0 : i32
    return %arg0, %arg1 : i32, i32
  }
  func.func @transform_1(%arg0: i32, %arg1: i32) -> (i32, i32) {
    %c0_i32 = arith.constant 0 : i32
    %c0_i32_0 = arith.constant 0 : i32
    return %arg1, %c0_i32 : i32, i32
  }
  func.func @transform_2(%arg0: i32, %arg1: i32) -> (i32, i32) {
    %c0_i32 = arith.constant 0 : i32
    %c0_i32_0 = arith.constant 0 : i32
    return %arg0, %c0_i32 : i32, i32
  }
  func.func @transform_3(%arg0: i32, %arg1: i32) -> (i32, i32) {
    %c0_i32 = arith.constant 0 : i32
    %c0_i32_0 = arith.constant 0 : i32
    %c0_i32_1 = arith.constant 0 : i32
    return %c0_i32, %c0_i32_0 : i32, i32
  }
  func.func @transform_4(%arg0: i32, %arg1: i32) -> (i32, i32) {
    %c0_i32 = arith.constant 0 : i32
    %c0_i32_0 = arith.constant 0 : i32
    %c0_i32_1 = arith.constant 0 : i32
    return %c0_i32, %c0_i32_0 : i32, i32
  }
  func.func @transform_5(%arg0: i32, %arg1: i32) -> (i32, i32) {
    %c0_i32 = arith.constant 0 : i32
    %c0_i32_0 = arith.constant 0 : i32
    return %arg0, %c0_i32 : i32, i32
  }
}

module attributes {stable_mosaic.version = 11 : i64} {
  func.func @sun_kernel(%arg0: i32, %arg1: i32, %arg2: memref<256x256xbf16, #tpu.memory_space<vmem>>, %arg3: memref<256x128xbf16, #tpu.memory_space<vmem>>, %arg4: memref<256x33xf32, #tpu.memory_space<vmem>>, %arg5: memref<33x128xf32, #tpu.memory_space<vmem>>, %arg6: memref<1x128xf32, #tpu.memory_space<vmem>>, %arg7: memref<256x128xf32, #tpu.memory_space<vmem>>) attributes {dimension_semantics = [#tpu.dimension_semantics<parallel>, #tpu.dimension_semantics<arbitrary>], iteration_bounds = array<i64: 1, 1>, scalar_prefetch = 0 : i64, scratch_operands = 0 : i64, tpu.core_type = #tpu.core_type<tc>, window_params = [{transform_indices = @transform_0, window_bounds = array<i64: 256, 256>}, {transform_indices = @transform_1, window_bounds = array<i64: 256, 128>}, {transform_indices = @transform_2, window_bounds = array<i64: 256, 33>}, {pipeline_mode = #tpu.pipeline_mode<synchronous>, transform_indices = @transform_3, window_bounds = array<i64: 33, 128>}, {pipeline_mode = #tpu.pipeline_mode<synchronous>, transform_indices = @transform_4, window_bounds = array<i64: 1, 128>}, {transform_indices = @transform_5, window_bounds = array<i64: 256, 128>}]} {
    %c0_i32 = arith.constant 0 : i32
    %0 = arith.cmpi eq, %arg1, %c0_i32 : i32
    %1 = arith.extui %0 : i1 to i32
    %c0_i32_0 = arith.constant 0 : i32
    %2 = arith.cmpi ne, %1, %c0_i32_0 : i32
    scf.if %2 {
      %c0_8 = arith.constant 0 : index
      %c0_9 = arith.constant 0 : index
      %9 = vector.load %arg4[%c0_8, %c0_9] : memref<256x33xf32, #tpu.memory_space<vmem>>, vector<256x33xf32>
      %c0_10 = arith.constant 0 : index
      %c0_11 = arith.constant 0 : index
      %10 = vector.load %arg5[%c0_10, %c0_11] : memref<33x128xf32, #tpu.memory_space<vmem>>, vector<33x128xf32>
      %cst_12 = arith.constant dense<0.000000e+00> : vector<256x128xf32>
      %11 = tpu.matmul %9, %10, %cst_12 {dimension_numbers = #tpu.dot_dimension_numbers<[1], [0], [0], [1], [0, 0, 1, 1], [], []>} : vector<256x33xf32>, vector<33x128xf32>, vector<256x128xf32> -> vector<256x128xf32>
      %c0_13 = arith.constant 0 : index
      %c0_14 = arith.constant 0 : index
      %12 = vector.load %arg6[%c0_13, %c0_14] : memref<1x128xf32, #tpu.memory_space<vmem>>, vector<1x128xf32>
      %13 = vector.broadcast %12 : vector<1x128xf32> to vector<256x128xf32>
      %14 = arith.addf %11, %13 : vector<256x128xf32>
      %c0_15 = arith.constant 0 : index
      %c0_16 = arith.constant 0 : index
      %15 = vector.load %arg7[%c0_15, %c0_16] : memref<256x128xf32, #tpu.memory_space<vmem>>, vector<256x128xf32>
      tpu.vector_store %arg7[%c0_15, %c0_16], %14 {strides = array<i32>} : memref<256x128xf32, #tpu.memory_space<vmem>>, vector<256x128xf32>,
    } else {
    }
    %c0 = arith.constant 0 : index
    %c0_1 = arith.constant 0 : index
    %3 = vector.load %arg2[%c0, %c0_1] : memref<256x256xbf16, #tpu.memory_space<vmem>>, vector<256x256xbf16>
    %c0_2 = arith.constant 0 : index
    %c0_3 = arith.constant 0 : index
    %4 = vector.load %arg7[%c0_2, %c0_3] : memref<256x128xf32, #tpu.memory_space<vmem>>, vector<256x128xf32>
    %c0_4 = arith.constant 0 : index
    %c0_5 = arith.constant 0 : index
    %5 = vector.load %arg3[%c0_4, %c0_5] : memref<256x128xbf16, #tpu.memory_space<vmem>>, vector<256x128xbf16>
    %cst = arith.constant dense<0.000000e+00> : vector<256x128xf32>
    %6 = tpu.matmul %3, %5, %cst {dimension_numbers = #tpu.dot_dimension_numbers<[1], [0], [0], [1], [0, 0, 1, 1], [], []>} : vector<256x256xbf16>, vector<256x128xbf16>, vector<256x128xf32> -> vector<256x128xf32>
    %7 = arith.addf %4, %6 : vector<256x128xf32>
    %c0_6 = arith.constant 0 : index
    %c0_7 = arith.constant 0 : index
    %8 = vector.load %arg7[%c0_6, %c0_7] : memref<256x128xf32, #tpu.memory_space<vmem>>, vector<256x128xf32>
    tpu.vector_store %arg7[%c0_6, %c0_7], %7 {strides = array<i32>} : memref<256x128xf32, #tpu.memory_space<vmem>>, vector<256x128xf32>,
    return
  }
  func.func @transform_0(%arg0: i32, %arg1: i32) -> (i32, i32) {
    %c0_i32 = arith.constant 0 : i32
    return %arg0, %arg1 : i32, i32
  }
  func.func @transform_1(%arg0: i32, %arg1: i32) -> (i32, i32) {
    %c0_i32 = arith.constant 0 : i32
    %c0_i32_0 = arith.constant 0 : i32
    return %arg1, %c0_i32 : i32, i32
  }
  func.func @transform_2(%arg0: i32, %arg1: i32) -> (i32, i32) {
    %c0_i32 = arith.constant 0 : i32
    %c0_i32_0 = arith.constant 0 : i32
    return %arg0, %c0_i32 : i32, i32
  }
  func.func @transform_3(%arg0: i32, %arg1: i32) -> (i32, i32) {
    %c0_i32 = arith.constant 0 : i32
    %c0_i32_0 = arith.constant 0 : i32
    %c0_i32_1 = arith.constant 0 : i32
    return %c0_i32, %c0_i32_0 : i32, i32
  }
  func.func @transform_4(%arg0: i32, %arg1: i32) -> (i32, i32) {
    %c0_i32 = arith.constant 0 : i32
    %c0_i32_0 = arith.constant 0 : i32
    %c0_i32_1 = arith.constant 0 : i32
    return %c0_i32, %c0_i32_0 : i32, i32
  }
  func.func @transform_5(%arg0: i32, %arg1: i32) -> (i32, i32) {
    %c0_i32 = arith.constant 0 : i32
    %c0_i32_0 = arith.constant 0 : i32
    return %arg0, %c0_i32 : i32, i32
  }
}

</mosaic_0001>

<llo_original>
// kernel: sun_layer_forward.1
$region0: #{sun_layer_forward.1}
  #allocation0 [shape = 'u32[]', space=smem, size = 0x4, offset = 0x4, fixed_abs, tag = 'smem constant byte address 0x4 - core index']
  #allocation1 [shape = 'u32[144,128]{1,0:T(1,128)}', space=vmem, size = 0x12000, scoped, tag = 'internal scratch']
  %s0 = inlined_call_operand.vmem [shape: s8[256,256], index: 0, kind: input, shape index: {}]
  %s1 = inlined_call_operand.vmem [shape: bf16[256,128], index: 1, kind: input, shape index: {}]
  %s2 = inlined_call_operand.vmem [shape: f32[256,33], index: 2, kind: input, shape index: {}]
  %s3 = inlined_call_operand.vmem [shape: f32[33,128], index: 3, kind: input, shape index: {}]
  %s4 = inlined_call_operand.vmem [shape: f32[1,128], index: 4, kind: input, shape index: {}]
  %s5 = inlined_call_operand.vmem [shape: f32[256,128], index: 5, kind: output, shape index: {}]
  %s6 = sld [smem:[#allocation0]]
  $region34: #{sun_layer_forward.1} parent=0
    _
  %s8 = ssub.s32 1, %s6
  %s9 = scalar_select 0, %s8, %s6
  // Predicated region
  $region2: #{sun_layer_forward.1} parent=0 // pred_check
    _
  $region3: #{sun_layer_forward.1} parent=0 // pred_check_branch
    %11 = sbr.rel (0) target = $region5
  $region4: #{sun_layer_forward.1} parent=0 // pred_region
    _
  $region5: #{sun_layer_forward.1} parent=0 // pred_fallthru
    _
  // Predicated region
  $region6: #{sun_layer_forward.1} parent=0 // pred_check
    _
  $region7: #{sun_layer_forward.1} parent=0 // pred_check_branch
    %13 = sbr.rel (0) target = $region9
  $region8: #{sun_layer_forward.1} parent=0 // pred_region
    _
  $region9: #{sun_layer_forward.1} parent=0 // pred_fallthru
    _
  // Predicated region
  $region10: #{sun_layer_forward.1} parent=0 // pred_check
    _
  $region11: #{sun_layer_forward.1} parent=0 // pred_check_branch
    %15 = sbr.rel (0) target = $region13
  $region12: #{sun_layer_forward.1} parent=0 // pred_region
    _
  $region13: #{sun_layer_forward.1} parent=0 // pred_fallthru
    _
  // Predicated region
  $region14: #{sun_layer_forward.1} parent=0 // pred_check
    _
  $region15: #{sun_layer_forward.1} parent=0 // pred_check_branch
    %17 = sbr.rel (0) target = $region17
  $region16: #{sun_layer_forward.1} parent=0 // pred_region
    _
  $region17: #{sun_layer_forward.1} parent=0 // pred_fallthru
    _
  // Predicated region
  $region18: #{sun_layer_forward.1} parent=0 // pred_check
    _
  $region19: #{sun_layer_forward.1} parent=0 // pred_check_branch
    %19 = sbr.rel (0) target = $region21
  $region20: #{sun_layer_forward.1} parent=0 // pred_region
    _
  $region21: #{sun_layer_forward.1} parent=0 // pred_fallthru
    _
  %p21 = scmp.eq.s32.totalorder 0, 0
  // Predicated region
  $region22: #{sun_layer_forward.1} parent=0 // pred_check
    %p22 = pneg %p21
  $region23: #{sun_layer_forward.1} parent=0 // pred_check_branch
    %24 = sbr.rel (%p22) target = $region25
  $region24: #{sun_layer_forward.1} parent=0 // pred_region
    %v25 = vld [vmem:[%s2] sm:$0xff]
    %v26 = vld [vmem:[%s2 + $0x8] sm:$0xff]
    %v27 = vld [vmem:[%s2 + $0x10] sm:$0xff]
    %v28 = vld [vmem:[%s2 + $0x18] sm:$0xff]
    %v29 = vld [vmem:[%s2 + $0x20] sm:$0xff]
    %v30 = vld [vmem:[%s2 + $0x28] sm:$0xff]
    %v31 = vld [vmem:[%s2 + $0x30] sm:$0xff]
    %v32 = vld [vmem:[%s2 + $0x38] sm:$0xff]
    %v33 = vld [vmem:[%s2 + $0x40] sm:$0xff]
    %v34 = vld [vmem:[%s2 + $0x48] sm:$0xff]
    %v35 = vld [vmem:[%s2 + $0x50] sm:$0xff]
    %v36 = vld [vmem:[%s2 + $0x58] sm:$0xff]
    %v37 = vld [vmem:[%s2 + $0x60] sm:$0xff]
    %v38 = vld [vmem:[%s2 + $0x68] sm:$0xff]
    %v39 = vld [vmem:[%s2 + $0x70] sm:$0xff]
    %v40 = vld [vmem:[%s2 + $0x78] sm:$0xff]
    %v41 = vld [vmem:[%s2 + $0x80] sm:$0xff]
    %v42 = vld [vmem:[%s2 + $0x88] sm:$0xff]
    %v43 = vld [vmem:[%s2 + $0x90] sm:$0xff]
    %v44 = vld [vmem:[%s2 + $0x98] sm:$0xff]
    %v45 = vld [vmem:[%s2 + $0xa0] sm:$0xff]
    %v46 = vld [vmem:[%s2 + $0xa8] sm:$0xff]
    %v47 = vld [vmem:[%s2 + $0xb0] sm:$0xff]
    %v48 = vld [vmem:[%s2 + $0xb8] sm:$0xff]
    %v49 = vld [vmem:[%s2 + $0xc0] sm:$0xff]
    %v50 = vld [vmem:[%s2 + $0xc8] sm:$0xff]
    %v51 = vld [vmem:[%s2 + $0xd0] sm:$0xff]
    %v52 = vld [vmem:[%s2 + $0xd8] sm:$0xff]
    %v53 = vld [vmem:[%s2 + $0xe0] sm:$0xff]
    %v54 = vld [vmem:[%s2 + $0xe8] sm:$0xff]
    %v55 = vld [vmem:[%s2 + $0xf0] sm:$0xff]
    %v56 = vld [vmem:[%s2 + $0xf8] sm:$0xff]
    %v57 = vld [vmem:[%s3] sm:$0xff]
    %v58 = vld [vmem:[%s3 + $0x8] sm:$0xff]
    %v59 = vld [vmem:[%s3 + $0x10] sm:$0xff]
    %v60 = vld [vmem:[%s3 + $0x18] sm:$0xff]
    %v61 = vld [vmem:[%s3 + $0x20] sm:$0x1]
    %v62 = vld [vmem:[%s4] sm:$0x1]
    %v64 = vlaneseq
    %v65 = vshrl.u32 %v64, 7
    %v66 = vsub.s32 0, %v65
    %v67 = vrot.slane %v62, %v66
    %vm69 = vcmask 269312
    %v71 = vsel %vm69, %v25, 0
    %v74 = vsel %vm69, %v26, 0
    %v77 = vsel %vm69, %v27, 0
    %v80 = vsel %vm69, %v28, 0
    %v83 = vsel %vm69, %v29, 0
    %v86 = vsel %vm69, %v30, 0
    %v89 = vsel %vm69, %v31, 0
    %v92 = vsel %vm69, %v32, 0
    %v95 = vsel %vm69, %v33, 0
    %v98 = vsel %vm69, %v34, 0
    %v101 = vsel %vm69, %v35, 0
    %v104 = vsel %vm69, %v36, 0
    %v107 = vsel %vm69, %v37, 0
    %v110 = vsel %vm69, %v38, 0
    %v113 = vsel %vm69, %v39, 0
    %v116 = vsel %vm69, %v40, 0
    %v119 = vsel %vm69, %v41, 0
    %v122 = vsel %vm69, %v42, 0
    %v125 = vsel %vm69, %v43, 0
    %v128 = vsel %vm69, %v44, 0
    %v131 = vsel %vm69, %v45, 0
    %v134 = vsel %vm69, %v46, 0
    %v137 = vsel %vm69, %v47, 0
    %v140 = vsel %vm69, %v48, 0
    %v143 = vsel %vm69, %v49, 0
    %v146 = vsel %vm69, %v50, 0
    %v149 = vsel %vm69, %v51, 0
    %v152 = vsel %vm69, %v52, 0
    %v155 = vsel %vm69, %v53, 0
    %v158 = vsel %vm69, %v54, 0
    %v161 = vsel %vm69, %v55, 0
    %v164 = vsel %vm69, %v56, 0
    %vm166 = vcmask 1040384
    %v168 = vsel %vm166, %v61, 0
    %170 = vmatprep.subr.mxu0 0.0
    %171 = vmatpush1.msra.mxu0 0.0
    %172 = vmatprep.subr.mxu0 0.0
    %173 = vmatpush1.msra.mxu0 0.0
    %174 = vmatprep.subr.mxu0 0.0
    %175 = vmatpush1.msra.mxu0 0.0
    %176 = vmatprep.subr.mxu0 0.0
    %177 = vmatpush1.msra.mxu0 0.0
    %178 = vmatprep.subr.mxu0 0.0
    %179 = vmatpush1.msra.mxu0 0.0
    %180 = vmatprep.subr.mxu0 0.0
    %181 = vmatpush1.msra.mxu0 0.0
    %182 = vmatprep.subr.mxu0 0.0
    %183 = vmatpush1.msra.mxu0 0.0
    %184 = vmatprep.subr.mxu0 0.0
    %185 = vmatpush1.msra.mxu0 0.0
    %186 = vmatprep.subr.mxu0 0.0
    %187 = vmatpush1.msra.mxu0 0.0
    %188 = vmatprep.subr.mxu0 0.0
    %189 = vmatpush1.msra.mxu0 0.0
    %190 = vmatprep.subr.mxu0 0.0
    %191 = vmatpush1.msra.mxu0 0.0
    %192 = vmatprep.subr.mxu0 0.0
    %193 = vmatpush1.msra.mxu0 %v168
    %194 = vmatprep.subr.mxu0 0.0
    %195 = vmatpush1.msra.mxu0 %v60
    %196 = vmatprep.subr.mxu0 0.0
    %197 = vmatpush1.msra.mxu0 %v59
    %198 = vmatprep.subr.mxu0 0.0
    %199 = vmatpush1.msra.mxu0 %v58
    %200 = vmatprep.subr.mxu0 0.0
    %201 = vmatpush1.msra.mxu0 %v57
    %202 = vmatprep.subr.mxu0 0.0
    %203 = vmatpush2.msra.mxu0 0.0
    %204 = vmatprep.subr.mxu0 0.0
    %205 = vmatpush2.msra.mxu0 0.0
    %206 = vmatprep.subr.mxu0 0.0
    %207 = vmatpush2.msra.mxu0 0.0
    %208 = vmatprep.subr.mxu0 0.0
    %209 = vmatpush2.msra.mxu0 0.0
    %210 = vmatprep.subr.mxu0 0.0
    %211 = vmatpush2.msra.mxu0 0.0
    %212 = vmatprep.subr.mxu0 0.0
    %213 = vmatpush2.msra.mxu0 0.0
    %214 = vmatprep.subr.mxu0 0.0
    %215 = vmatpush2.msra.mxu0 0.0
    %216 = vmatprep.subr.mxu0 0.0
    %217 = vmatpush2.msra.mxu0 0.0
    %218 = vmatprep.subr.mxu0 0.0
    %219 = vmatpush2.msra.mxu0 0.0
    %220 = vmatprep.subr.mxu0 0.0
    %221 = vmatpush2.msra.mxu0 0.0
    %222 = vmatprep.subr.mxu0 0.0
    %223 = vmatpush2.msra.mxu0 0.0
    %224 = vmatprep.subr.mxu0 0.0
    %225 = vmatpush2.msra.mxu0 0.0
    %226 = vmatprep.subr.mxu0 0.0
    %227 = vmatpush2.msra.mxu0 0.0
    %228 = vmatprep.subr.mxu0 0.0
    %229 = vmatpush2.msra.mxu0 0.0
    %230 = vmatprep.subr.mxu0 0.0
    %231 = vmatpush2.msra.mxu0 0.0
    %232 = vmatprep.subr.mxu0 0.0
    %233 = vmatpush2.msra.mxu0 0.0
    %234 = vmatprep.mubr.f32.mxu0 0.0
    %235 = vmatmul.mubr.f32.gmra.mxu0 %v71
    %v236 = vpop.f32.mrf.mxu0
    %v237 = vadd.f32 %v67, %v236
    %v238 = vpop.f32.mrf.mxu0
    %239 = vmatprep.mubr.f32.mxu0 0.0
    %240 = vmatmul.mubr.f32.gmra.mxu0 %v74
    %v241 = vpop.f32.mrf.mxu0
    %v242 = vadd.f32 %v67, %v241
    %v243 = vpop.f32.mrf.mxu0
    %244 = vmatprep.mubr.f32.mxu0 0.0
    %245 = vmatmul.mubr.f32.gmra.mxu0 %v77
    %v246 = vpop.f32.mrf.mxu0
    %v247 = vadd.f32 %v67, %v246
    %v248 = vpop.f32.mrf.mxu0
    %249 = vmatprep.mubr.f32.mxu0 0.0
    %250 = vmatmul.mubr.f32.gmra.mxu0 %v80
    %v251 = vpop.f32.mrf.mxu0
    %v252 = vadd.f32 %v67, %v251
    %v253 = vpop.f32.mrf.mxu0
    %254 = vmatprep.mubr.f32.mxu0 0.0
    %255 = vmatmul.mubr.f32.gmra.mxu0 %v83
    %v256 = vpop.f32.mrf.mxu0
    %v257 = vadd.f32 %v67, %v256
    %v258 = vpop.f32.mrf.mxu0
    %259 = vmatprep.mubr.f32.mxu0 0.0
    %260 = vmatmul.mubr.f32.gmra.mxu0 %v86
    %v261 = vpop.f32.mrf.mxu0
    %v262 = vadd.f32 %v67, %v261
    %v263 = vpop.f32.mrf.mxu0
    %264 = vmatprep.mubr.f32.mxu0 0.0
    %265 = vmatmul.mubr.f32.gmra.mxu0 %v89
    %v266 = vpop.f32.mrf.mxu0
    %v267 = vadd.f32 %v67, %v266
    %v268 = vpop.f32.mrf.mxu0
    %269 = vmatprep.mubr.f32.mxu0 0.0
    %270 = vmatmul.mubr.f32.gmra.mxu0 %v92
    %v271 = vpop.f32.mrf.mxu0
    %v272 = vadd.f32 %v67, %v271
    %v273 = vpop.f32.mrf.mxu0
    %274 = vmatprep.mubr.f32.mxu0 0.0
    %275 = vmatmul.mubr.f32.gmra.mxu0 %v95
    %v276 = vpop.f32.mrf.mxu0
    %v277 = vadd.f32 %v67, %v276
    %v278 = vpop.f32.mrf.mxu0
    %279 = vmatprep.mubr.f32.mxu0 0.0
    %280 = vmatmul.mubr.f32.gmra.mxu0 %v98
    %v281 = vpop.f32.mrf.mxu0
    %v282 = vadd.f32 %v67, %v281
    %v283 = vpop.f32.mrf.mxu0
    %284 = vmatprep.mubr.f32.mxu0 0.0
    %285 = vmatmul.mubr.f32.gmra.mxu0 %v101
    %v286 = vpop.f32.mrf.mxu0
    %v287 = vadd.f32 %v67, %v286
    %v288 = vpop.f32.mrf.mxu0
    %289 = vmatprep.mubr.f32.mxu0 0.0
    %290 = vmatmul.mubr.f32.gmra.mxu0 %v104
    %v291 = vpop.f32.mrf.mxu0
    %v292 = vadd.f32 %v67, %v291
    %v293 = vpop.f32.mrf.mxu0
    %294 = vmatprep.mubr.f32.mxu0 0.0
    %295 = vmatmul.mubr.f32.gmra.mxu0 %v107
    %v296 = vpop.f32.mrf.mxu0
    %v297 = vadd.f32 %v67, %v296
    %v298 = vpop.f32.mrf.mxu0
    %299 = vmatprep.mubr.f32.mxu0 0.0
    %300 = vmatmul.mubr.f32.gmra.mxu0 %v110
    %v301 = vpop.f32.mrf.mxu0
    %v302 = vadd.f32 %v67, %v301
    %v303 = vpop.f32.mrf.mxu0
    %304 = vmatprep.mubr.f32.mxu0 0.0
    %305 = vmatmul.mubr.f32.gmra.mxu0 %v113
    %v306 = vpop.f32.mrf.mxu0
    %v307 = vadd.f32 %v67, %v306
    %v308 = vpop.f32.mrf.mxu0
    %309 = vmatprep.mubr.f32.mxu0 0.0
    %310 = vmatmul.mubr.f32.gmra.mxu0 %v116
    %v311 = vpop.f32.mrf.mxu0
    %v312 = vadd.f32 %v67, %v311
    %v313 = vpop.f32.mrf.mxu0
    %314 = vmatprep.mubr.f32.mxu0 0.0
    %315 = vmatmul.mubr.f32.gmra.mxu0 %v119
    %v316 = vpop.f32.mrf.mxu0
    %v317 = vadd.f32 %v67, %v316
    %v318 = vpop.f32.mrf.mxu0
    %319 = vmatprep.mubr.f32.mxu0 0.0
    %320 = vmatmul.mubr.f32.gmra.mxu0 %v122
    %v321 = vpop.f32.mrf.mxu0
    %v322 = vadd.f32 %v67, %v321
    %v323 = vpop.f32.mrf.mxu0
    %324 = vmatprep.mubr.f32.mxu0 0.0
    %325 = vmatmul.mubr.f32.gmra.mxu0 %v125
    %v326 = vpop.f32.mrf.mxu0
    %v327 = vadd.f32 %v67, %v326
    %v328 = vpop.f32.mrf.mxu0
    %329 = vmatprep.mubr.f32.mxu0 0.0
    %330 = vmatmul.mubr.f32.gmra.mxu0 %v128
    %v331 = vpop.f32.mrf.mxu0
    %v332 = vadd.f32 %v67, %v331
    %v333 = vpop.f32.mrf.mxu0
    %334 = vmatprep.mubr.f32.mxu0 0.0
    %335 = vmatmul.mubr.f32.gmra.mxu0 %v131
    %v336 = vpop.f32.mrf.mxu0
    %v337 = vadd.f32 %v67, %v336
    %v338 = vpop.f32.mrf.mxu0
    %339 = vmatprep.mubr.f32.mxu0 0.0
    %340 = vmatmul.mubr.f32.gmra.mxu0 %v134
    %v341 = vpop.f32.mrf.mxu0
    %v342 = vadd.f32 %v67, %v341
    %v343 = vpop.f32.mrf.mxu0
    %344 = vmatprep.mubr.f32.mxu0 0.0
    %345 = vmatmul.mubr.f32.gmra.mxu0 %v137
    %v346 = vpop.f32.mrf.mxu0
    %v347 = vadd.f32 %v67, %v346
    %v348 = vpop.f32.mrf.mxu0
    %349 = vmatprep.mubr.f32.mxu0 0.0
    %350 = vmatmul.mubr.f32.gmra.mxu0 %v140
    %v351 = vpop.f32.mrf.mxu0
    %v352 = vadd.f32 %v67, %v351
    %v353 = vpop.f32.mrf.mxu0
    %354 = vmatprep.mubr.f32.mxu0 0.0
    %355 = vmatmul.mubr.f32.gmra.mxu0 %v143
    %v356 = vpop.f32.mrf.mxu0
    %v357 = vadd.f32 %v67, %v356
    %v358 = vpop.f32.mrf.mxu0
    %359 = vmatprep.mubr.f32.mxu0 0.0
    %360 = vmatmul.mubr.f32.gmra.mxu0 %v146
    %v361 = vpop.f32.mrf.mxu0
    %v362 = vadd.f32 %v67, %v361
    %v363 = vpop.f32.mrf.mxu0
    %364 = vmatprep.mubr.f32.mxu0 0.0
    %365 = vmatmul.mubr.f32.gmra.mxu0 %v149
    %v366 = vpop.f32.mrf.mxu0
    %v367 = vadd.f32 %v67, %v366
    %v368 = vpop.f32.mrf.mxu0
    %369 = vmatprep.mubr.f32.mxu0 0.0
    %370 = vmatmul.mubr.f32.gmra.mxu0 %v152
    %v371 = vpop.f32.mrf.mxu0
    %v372 = vadd.f32 %v67, %v371
    %v373 = vpop.f32.mrf.mxu0
    %374 = vmatprep.mubr.f32.mxu0 0.0
    %375 = vmatmul.mubr.f32.gmra.mxu0 %v155
    %v376 = vpop.f32.mrf.mxu0
    %v377 = vadd.f32 %v67, %v376
    %v378 = vpop.f32.mrf.mxu0
    %379 = vmatprep.mubr.f32.mxu0 0.0
    %380 = vmatmul.mubr.f32.gmra.mxu0 %v158
    %v381 = vpop.f32.mrf.mxu0
    %v382 = vadd.f32 %v67, %v381
    %v383 = vpop.f32.mrf.mxu0
    %384 = vmatprep.mubr.f32.mxu0 0.0
    %385 = vmatmul.mubr.f32.gmra.mxu0 %v161
    %v386 = vpop.f32.mrf.mxu0
    %v387 = vadd.f32 %v67, %v386
    %v388 = vpop.f32.mrf.mxu0
    %389 = vmatprep.mubr.f32.mxu0 0.0
    %390 = vmatmul.mubr.f32.gmra.mxu0 %v164
    %v391 = vpop.f32.mrf.mxu0
    %v392 = vadd.f32 %v67, %v391
    %v393 = vpop.f32.mrf.mxu0
    %394 = vdwg.mxu0
    %395 = vst [vmem:[%s5] sm:$0xff] %v237
    %396 = vst [vmem:[%s5 + $0x8] sm:$0xff] %v242
    %397 = vst [vmem:[%s5 + $0x10] sm:$0xff] %v247
    %398 = vst [vmem:[%s5 + $0x18] sm:$0xff] %v252
    %399 = vst [vmem:[%s5 + $0x20] sm:$0xff] %v257
    %400 = vst [vmem:[%s5 + $0x28] sm:$0xff] %v262
    %401 = vst [vmem:[%s5 + $0x30] sm:$0xff] %v267
    %402 = vst [vmem:[%s5 + $0x38] sm:$0xff] %v272
    %403 = vst [vmem:[%s5 + $0x40] sm:$0xff] %v277
    %404 = vst [vmem:[%s5 + $0x48] sm:$0xff] %v282
    %405 = vst [vmem:[%s5 + $0x50] sm:$0xff] %v287
    %406 = vst [vmem:[%s5 + $0x58] sm:$0xff] %v292
    %407 = vst [vmem:[%s5 + $0x60] sm:$0xff] %v297
    %408 = vst [vmem:[%s5 + $0x68] sm:$0xff] %v302
    %409 = vst [vmem:[%s5 + $0x70] sm:$0xff] %v307
    %410 = vst [vmem:[%s5 + $0x78] sm:$0xff] %v312
    %411 = vst [vmem:[%s5 + $0x80] sm:$0xff] %v317
    %412 = vst [vmem:[%s5 + $0x88] sm:$0xff] %v322
    %413 = vst [vmem:[%s5 + $0x90] sm:$0xff] %v327
    %414 = vst [vmem:[%s5 + $0x98] sm:$0xff] %v332
    %415 = vst [vmem:[%s5 + $0xa0] sm:$0xff] %v337
    %416 = vst [vmem:[%s5 + $0xa8] sm:$0xff] %v342
    %417 = vst [vmem:[%s5 + $0xb0] sm:$0xff] %v347
    %418 = vst [vmem:[%s5 + $0xb8] sm:$0xff] %v352
    %419 = vst [vmem:[%s5 + $0xc0] sm:$0xff] %v357
    %420 = vst [vmem:[%s5 + $0xc8] sm:$0xff] %v362
    %421 = vst [vmem:[%s5 + $0xd0] sm:$0xff] %v367
    %422 = vst [vmem:[%s5 + $0xd8] sm:$0xff] %v372
    %423 = vst [vmem:[%s5 + $0xe0] sm:$0xff] %v377
    %424 = vst [vmem:[%s5 + $0xe8] sm:$0xff] %v382
    %425 = vst [vmem:[%s5 + $0xf0] sm:$0xff] %v387
    %426 = vst [vmem:[%s5 + $0xf8] sm:$0xff] %v392
  $region25: #{sun_layer_forward.1} parent=0 // pred_fallthru
    _
  %v427 = vld [vmem:[%s0] sm:$0xf]
  %v428 = vld [vmem:[%s0 + $0x4] sm:$0xf]
  %v429 = vld [vmem:[%s0 + $0x8] sm:$0xf]
  %v430 = vld [vmem:[%s0 + $0xc] sm:$0xf]
  %v431 = vld [vmem:[%s0 + $0x10] sm:$0xf]
  %v432 = vld [vmem:[%s0 + $0x14] sm:$0xf]
  %v433 = vld [vmem:[%s0 + $0x18] sm:$0xf]
  %v434 = vld [vmem:[%s0 + $0x1c] sm:$0xf]
  %v435 = vld [vmem:[%s0 + $0x20] sm:$0xf]
  %v436 = vld [vmem:[%s0 + $0x24] sm:$0xf]
  %v437 = vld [vmem:[%s0 + $0x28] sm:$0xf]
  %v438 = vld [vmem:[%s0 + $0x2c] sm:$0xf]
  %v439 = vld [vmem:[%s0 + $0x30] sm:$0xf]
  %v440 = vld [vmem:[%s0 + $0x34] sm:$0xf]
  %v441 = vld [vmem:[%s0 + $0x38] sm:$0xf]
  %v442 = vld [vmem:[%s0 + $0x3c] sm:$0xf]
  %v443 = vld [vmem:[%s0 + $0x40] sm:$0xf]
  %v444 = vld [vmem:[%s0 + $0x44] sm:$0xf]
  %v445 = vld [vmem:[%s0 + $0x48] sm:$0xf]
  %v446 = vld [vmem:[%s0 + $0x4c] sm:$0xf]
  %v447 = vld [vmem:[%s0 + $0x50] sm:$0xf]
  %v448 = vld [vmem:[%s0 + $0x54] sm:$0xf]
  %v449 = vld [vmem:[%s0 + $0x58] sm:$0xf]
  %v450 = vld [vmem:[%s0 + $0x5c] sm:$0xf]
  %v451 = vld [vmem:[%s0 + $0x60] sm:$0xf]
  %v452 = vld [vmem:[%s0 + $0x64] sm:$0xf]
  %v453 = vld [vmem:[%s0 + $0x68] sm:$0xf]
  %v454 = vld [vmem:[%s0 + $0x6c] sm:$0xf]
  %v455 = vld [vmem:[%s0 + $0x70] sm:$0xf]
  %v456 = vld [vmem:[%s0 + $0x74] sm:$0xf]
  %v457 = vld [vmem:[%s0 + $0x78] sm:$0xf]
  %v458 = vld [vmem:[%s0 + $0x7c] sm:$0xf]
  %v459 = vunpack.c.l.s8.bf16 %v427
  %v460 = vunpack.c.l.s8.bf16 %v428
  %v461 = vunpack.c.l.s8.bf16 %v429
  %v462 = vunpack.c.l.s8.bf16 %v430
  %v463 = vunpack.c.l.s8.bf16 %v431
  %v464 = vunpack.c.l.s8.bf16 %v432
  %v465 = vunpack.c.l.s8.bf16 %v433
  %v466 = vunpack.c.l.s8.bf16 %v434
  %v467 = vunpack.c.l.s8.bf16 %v435
  %v468 = vunpack.c.l.s8.bf16 %v436
  %v469 = vunpack.c.l.s8.bf16 %v437
  %v470 = vunpack.c.l.s8.bf16 %v438
  %v471 = vunpack.c.l.s8.bf16 %v439
  %v472 = vunpack.c.l.s8.bf16 %v440
  %v473 = vunpack.c.l.s8.bf16 %v441
  %v474 = vunpack.c.l.s8.bf16 %v442
  %v475 = vunpack.c.l.s8.bf16 %v443
  %v476 = vunpack.c.l.s8.bf16 %v444
  %v477 = vunpack.c.l.s8.bf16 %v445
  %v478 = vunpack.c.l.s8.bf16 %v446
  %v479 = vunpack.c.l.s8.bf16 %v447
  %v480 = vunpack.c.l.s8.bf16 %v448
  %v481 = vunpack.c.l.s8.bf16 %v449
  %v482 = vunpack.c.l.s8.bf16 %v450
  %v483 = vunpack.c.l.s8.bf16 %v451
  %v484 = vunpack.c.l.s8.bf16 %v452
  %v485 = vunpack.c.l.s8.bf16 %v453
  %v486 = vunpack.c.l.s8.bf16 %v454
  %v487 = vunpack.c.l.s8.bf16 %v455
  %v488 = vunpack.c.l.s8.bf16 %v456
  %v489 = vunpack.c.l.s8.bf16 %v457
  %v490 = vunpack.c.l.s8.bf16 %v458
  %v491 = vld [vmem:[%s5] sm:$0xff]
  %v492 = vld [vmem:[%s5 + $0x8] sm:$0xff]
  %v493 = vld [vmem:[%s5 + $0x10] sm:$0xff]
  %v494 = vld [vmem:[%s5 + $0x18] sm:$0xff]
  %v495 = vld [vmem:[%s5 + $0x20] sm:$0xff]
  %v496 = vld [vmem:[%s5 + $0x28] sm:$0xff]
  %v497 = vld [vmem:[%s5 + $0x30] sm:$0xff]
  %v498 = vld [vmem:[%s5 + $0x38] sm:$0xff]
  %v499 = vld [vmem:[%s5 + $0x40] sm:$0xff]
  %v500 = vld [vmem:[%s5 + $0x48] sm:$0xff]
  %v501 = vld [vmem:[%s5 + $0x50] sm:$0xff]
  %v502 = vld [vmem:[%s5 + $0x58] sm:$0xff]
  %v503 = vld [vmem:[%s5 + $0x60] sm:$0xff]
  %v504 = vld [vmem:[%s5 + $0x68] sm:$0xff]
  %v505 = vld [vmem:[%s5 + $0x70] sm:$0xff]
  %v506 = vld [vmem:[%s5 + $0x78] sm:$0xff]
  %v507 = vld [vmem:[%s5 + $0x80] sm:$0xff]
  %v508 = vld [vmem:[%s5 + $0x88] sm:$0xff]
  %v509 = vld [vmem:[%s5 + $0x90] sm:$0xff]
  %v510 = vld [vmem:[%s5 + $0x98] sm:$0xff]
  %v511 = vld [vmem:[%s5 + $0xa0] sm:$0xff]
  %v512 = vld [vmem:[%s5 + $0xa8] sm:$0xff]
  %v513 = vld [vmem:[%s5 + $0xb0] sm:$0xff]
  %v514 = vld [vmem:[%s5 + $0xb8] sm:$0xff]
  %v515 = vld [vmem:[%s5 + $0xc0] sm:$0xff]
  %v516 = vld [vmem:[%s5 + $0xc8] sm:$0xff]
  %v517 = vld [vmem:[%s5 + $0xd0] sm:$0xff]
  %v518 = vld [vmem:[%s5 + $0xd8] sm:$0xff]
  %v519 = vld [vmem:[%s5 + $0xe0] sm:$0xff]
  %v520 = vld [vmem:[%s5 + $0xe8] sm:$0xff]
  %v521 = vld [vmem:[%s5 + $0xf0] sm:$0xff]
  %v522 = vld [vmem:[%s5 + $0xf8] sm:$0xff]
  %v523 = vld [vmem:[%s1] sm:$0xf]
  %v524 = vld [vmem:[%s1 + $0x4] sm:$0xf]
  %v525 = vld [vmem:[%s1 + $0x8] sm:$0xf]
  %v526 = vld [vmem:[%s1 + $0xc] sm:$0xf]
  %v527 = vld [vmem:[%s1 + $0x10] sm:$0xf]
  %v528 = vld [vmem:[%s1 + $0x14] sm:$0xf]
  %v529 = vld [vmem:[%s1 + $0x18] sm:$0xf]
  %v530 = vld [vmem:[%s1 + $0x1c] sm:$0xf]
  %v531 = vld [vmem:[%s1 + $0x20] sm:$0xf]
  %v532 = vld [vmem:[%s1 + $0x24] sm:$0xf]
  %v533 = vld [vmem:[%s1 + $0x28] sm:$0xf]
  %v534 = vld [vmem:[%s1 + $0x2c] sm:$0xf]
  %v535 = vld [vmem:[%s1 + $0x30] sm:$0xf]
  %v536 = vld [vmem:[%s1 + $0x34] sm:$0xf]
  %v537 = vld [vmem:[%s1 + $0x38] sm:$0xf]
  %v538 = vld [vmem:[%s1 + $0x3c] sm:$0xf]
  %v539 = vld [vmem:[%s1 + $0x40] sm:$0xf]
  %v540 = vld [vmem:[%s1 + $0x44] sm:$0xf]
  %v541 = vld [vmem:[%s1 + $0x48] sm:$0xf]
  %v542 = vld [vmem:[%s1 + $0x4c] sm:$0xf]
  %v543 = vld [vmem:[%s1 + $0x50] sm:$0xf]
  %v544 = vld [vmem:[%s1 + $0x54] sm:$0xf]
  %v545 = vld [vmem:[%s1 + $0x58] sm:$0xf]
  %v546 = vld [vmem:[%s1 + $0x5c] sm:$0xf]
  %v547 = vld [vmem:[%s1 + $0x60] sm:$0xf]
  %v548 = vld [vmem:[%s1 + $0x64] sm:$0xf]
  %v549 = vld [vmem:[%s1 + $0x68] sm:$0xf]
  %v550 = vld [vmem:[%s1 + $0x6c] sm:$0xf]
  %v551 = vld [vmem:[%s1 + $0x70] sm:$0xf]
  %v552 = vld [vmem:[%s1 + $0x74] sm:$0xf]
  %v553 = vld [vmem:[%s1 + $0x78] sm:$0xf]
  %v554 = vld [vmem:[%s1 + $0x7c] sm:$0xf]
  %v587 = vunpack.c.l.b16 %v459
  %v588 = vunpack.c.h.b16 %v459
  %v589 = vunpack.c.l.b16 %v460
  %v590 = vunpack.c.h.b16 %v460
  %v591 = vunpack.c.l.b16 %v461
  %v592 = vunpack.c.h.b16 %v461
  %v593 = vunpack.c.l.b16 %v462
  %v594 = vunpack.c.h.b16 %v462
  %v595 = vunpack.c.l.b16 %v463
  %v596 = vunpack.c.h.b16 %v463
  %v597 = vunpack.c.l.b16 %v464
  %v598 = vunpack.c.h.b16 %v464
  %v599 = vunpack.c.l.b16 %v465
  %v600 = vunpack.c.h.b16 %v465
  %v601 = vunpack.c.l.b16 %v466
  %v602 = vunpack.c.h.b16 %v466
  %v603 = vunpack.c.l.b16 %v467
  %v604 = vunpack.c.h.b16 %v467
  %v605 = vunpack.c.l.b16 %v468
  %v606 = vunpack.c.h.b16 %v468
  %v607 = vunpack.c.l.b16 %v469
  %v608 = vunpack.c.h.b16 %v469
  %v609 = vunpack.c.l.b16 %v470
  %v610 = vunpack.c.h.b16 %v470
  %v611 = vunpack.c.l.b16 %v471
  %v612 = vunpack.c.h.b16 %v471
  %v613 = vunpack.c.l.b16 %v472
  %v614 = vunpack.c.h.b16 %v472
  %v615 = vunpack.c.l.b16 %v473
  %v616 = vunpack.c.h.b16 %v473
  %v617 = vunpack.c.l.b16 %v474
  %v618 = vunpack.c.h.b16 %v474
  %v619 = vunpack.c.l.b16 %v475
  %v620 = vunpack.c.h.b16 %v475
  %v621 = vunpack.c.l.b16 %v476
  %v622 = vunpack.c.h.b16 %v476
  %v623 = vunpack.c.l.b16 %v477
  %v624 = vunpack.c.h.b16 %v477
  %v625 = vunpack.c.l.b16 %v478
  %v626 = vunpack.c.h.b16 %v478
  %v627 = vunpack.c.l.b16 %v479
  %v628 = vunpack.c.h.b16 %v479
  %v629 = vunpack.c.l.b16 %v480
  %v630 = vunpack.c.h.b16 %v480
  %v631 = vunpack.c.l.b16 %v481
  %v632 = vunpack.c.h.b16 %v481
  %v633 = vunpack.c.l.b16 %v482
  %v634 = vunpack.c.h.b16 %v482
  %v635 = vunpack.c.l.b16 %v483
  %v636 = vunpack.c.h.b16 %v483
  %v637 = vunpack.c.l.b16 %v484
  %v638 = vunpack.c.h.b16 %v484
  %v639 = vunpack.c.l.b16 %v485
  %v640 = vunpack.c.h.b16 %v485
  %v641 = vunpack.c.l.b16 %v486
  %v642 = vunpack.c.h.b16 %v486
  %v643 = vunpack.c.l.b16 %v487
  %v644 = vunpack.c.h.b16 %v487
  %v645 = vunpack.c.l.b16 %v488
  %v646 = vunpack.c.h.b16 %v488
  %v647 = vunpack.c.l.b16 %v489
  %v648 = vunpack.c.h.b16 %v489
  %v649 = vunpack.c.l.b16 %v490
  %v650 = vunpack.c.h.b16 %v490
  %v651 = vpack.c.b16 %v589, %v587
  %v652 = vpack.c.b16 %v590, %v588
  %v653 = vpack.c.b16 %v593, %v591
  %v654 = vpack.c.b16 %v594, %v592
  %v655 = vpack.c.b16 %v597, %v595
  %v656 = vpack.c.b16 %v598, %v596
  %v657 = vpack.c.b16 %v601, %v599
  %v658 = vpack.c.b16 %v602, %v600
  %v659 = vpack.c.b16 %v605, %v603
  %v660 = vpack.c.b16 %v606, %v604
  %v661 = vpack.c.b16 %v609, %v607
  %v662 = vpack.c.b16 %v610, %v608
  %v663 = vpack.c.b16 %v613, %v611
  %v664 = vpack.c.b16 %v614, %v612
  %v665 = vpack.c.b16 %v617, %v615
  %v666 = vpack.c.b16 %v618, %v616
  %v667 = vpack.c.b16 %v621, %v619
  %v668 = vpack.c.b16 %v622, %v620
  %v669 = vpack.c.b16 %v625, %v623
  %v670 = vpack.c.b16 %v626, %v624
  %v671 = vpack.c.b16 %v629, %v627
  %v672 = vpack.c.b16 %v630, %v628
  %v673 = vpack.c.b16 %v633, %v631
  %v674 = vpack.c.b16 %v634, %v632
  %v675 = vpack.c.b16 %v637, %v635
  %v676 = vpack.c.b16 %v638, %v636
  %v677 = vpack.c.b16 %v641, %v639
  %v678 = vpack.c.b16 %v642, %v640
  %v679 = vpack.c.b16 %v645, %v643
  %v680 = vpack.c.b16 %v646, %v644
  %v681 = vpack.c.b16 %v649, %v647
  %v682 = vpack.c.b16 %v650, %v648
  %v747 = vunpack.c.l.b16 %v523
  %v748 = vunpack.c.l.b16 %v524
  %v749 = vunpack.c.l.b16 %v525
  %v750 = vunpack.c.l.b16 %v526
  %v751 = vunpack.c.l.b16 %v527
  %v752 = vunpack.c.l.b16 %v528
  %v753 = vunpack.c.l.b16 %v529
  %v754 = vunpack.c.l.b16 %v530
  %v755 = vunpack.c.l.b16 %v531
  %v756 = vunpack.c.l.b16 %v532
  %v757 = vunpack.c.l.b16 %v533
  %v758 = vunpack.c.l.b16 %v534
  %v759 = vunpack.c.l.b16 %v535
  %v760 = vunpack.c.l.b16 %v536
  %v761 = vunpack.c.l.b16 %v537
  %v762 = vunpack.c.l.b16 %v538
  %v763 = vunpack.c.l.b16 %v539
  %v764 = vunpack.c.l.b16 %v540
  %v765 = vunpack.c.l.b16 %v541
  %v766 = vunpack.c.l.b16 %v542
  %v767 = vunpack.c.l.b16 %v543
  %v768 = vunpack.c.l.b16 %v544
  %v769 = vunpack.c.l.b16 %v545
  %v770 = vunpack.c.l.b16 %v546
  %v771 = vunpack.c.l.b16 %v547
  %v772 = vunpack.c.l.b16 %v548
  %v773 = vunpack.c.l.b16 %v549
  %v774 = vunpack.c.l.b16 %v550
  %v775 = vunpack.c.l.b16 %v551
  %v776 = vunpack.c.l.b16 %v552
  %v777 = vunpack.c.l.b16 %v553
  %v778 = vunpack.c.l.b16 %v554
  %v779 = vpack.c.b16 %v748, %v747
  %v780 = vpack.c.b16 %v750, %v749
  %v781 = vpack.c.b16 %v752, %v751
  %v782 = vpack.c.b16 %v754, %v753
  %v783 = vpack.c.b16 %v756, %v755
  %v784 = vpack.c.b16 %v758, %v757
  %v785 = vpack.c.b16 %v760, %v759
  %v786 = vpack.c.b16 %v762, %v761
  %v787 = vpack.c.b16 %v764, %v763
  %v788 = vpack.c.b16 %v766, %v765
  %v789 = vpack.c.b16 %v768, %v767
  %v790 = vpack.c.b16 %v770, %v769
  %v791 = vpack.c.b16 %v772, %v771
  %v792 = vpack.c.b16 %v774, %v773
  %v793 = vpack.c.b16 %v776, %v775
  %v794 = vpack.c.b16 %v778, %v777
  %811 = vmatprep.subr.bf16.mxu0 0
  %812 = vmatpush1.bf16.msra.mxu0 %v786
  %813 = vmatprep.subr.bf16.mxu0 0
  %814 = vmatpush1.bf16.msra.mxu0 %v785
  %815 = vmatprep.subr.bf16.mxu0 0
  %816 = vmatpush1.bf16.msra.mxu0 %v784
  %817 = vmatprep.subr.bf16.mxu0 0
  %818 = vmatpush1.bf16.msra.mxu0 %v783
  %819 = vmatprep.subr.bf16.mxu0 0
  %820 = vmatpush1.bf16.msra.mxu0 %v782
  %821 = vmatprep.subr.bf16.mxu0 0
  %822 = vmatpush1.bf16.msra.mxu0 %v781
  %823 = vmatprep.subr.bf16.mxu0 0
  %824 = vmatpush1.bf16.msra.mxu0 %v780
  %825 = vmatprep.subr.bf16.mxu0 0
  %826 = vmatpush1.bf16.msra.mxu0 %v779
  %827 = vmatprep.subr.bf16.mxu0 0
  %828 = vmatpush2.bf16.msra.mxu0 %v794
  %829 = vmatprep.subr.bf16.mxu0 0
  %830 = vmatpush2.bf16.msra.mxu0 %v793
  %831 = vmatprep.subr.bf16.mxu0 0
  %832 = vmatpush2.bf16.msra.mxu0 %v792
  %833 = vmatprep.subr.bf16.mxu0 0
  %834 = vmatpush2.bf16.msra.mxu0 %v791
  %835 = vmatprep.subr.bf16.mxu0 0
  %836 = vmatpush2.bf16.msra.mxu0 %v790
  %837 = vmatprep.subr.bf16.mxu0 0
  %838 = vmatpush2.bf16.msra.mxu0 %v789
  %839 = vmatprep.subr.bf16.mxu0 0
  %840 = vmatpush2.bf16.msra.mxu0 %v788
  %841 = vmatprep.subr.bf16.mxu0 0
  %842 = vmatpush2.bf16.msra.mxu0 %v787
  %843 = vmatprep.mubr.bf16.mxu0 %v652
  %844 = vmatmul.mubr.bf16.gmra.mxu0 %v651
  %v845 = vpop.f32.mrf.mxu0
  %v846 = vadd.f32 0.0, %v845
  %v847 = vpop.f32.mrf.mxu0
  %v848 = vpop.f32.mrf.mxu0
  %v849 = vadd.f32 0.0, %v848
  %v850 = vpop.f32.mrf.mxu0
  %851 = vmatprep.mubr.bf16.mxu0 %v654
  %852 = vmatmul.mubr.bf16.gmra.mxu0 %v653
  %v853 = vpop.f32.mrf.mxu0
  %v854 = vadd.f32 0.0, %v853
  %v855 = vpop.f32.mrf.mxu0
  %v856 = vpop.f32.mrf.mxu0
  %v857 = vadd.f32 0.0, %v856
  %v858 = vpop.f32.mrf.mxu0
  %859 = vmatprep.mubr.bf16.mxu0 %v656
  %860 = vmatmul.mubr.bf16.gmra.mxu0 %v655
  %v861 = vpop.f32.mrf.mxu0
  %v862 = vadd.f32 0.0, %v861
  %v863 = vpop.f32.mrf.mxu0
  %v864 = vpop.f32.mrf.mxu0
  %v865 = vadd.f32 0.0, %v864
  %v866 = vpop.f32.mrf.mxu0
  %867 = vmatprep.mubr.bf16.mxu0 %v658
  %868 = vmatmul.mubr.bf16.gmra.mxu0 %v657
  %v869 = vpop.f32.mrf.mxu0
  %v870 = vadd.f32 0.0, %v869
  %v871 = vpop.f32.mrf.mxu0
  %v872 = vpop.f32.mrf.mxu0
  %v873 = vadd.f32 0.0, %v872
  %v874 = vpop.f32.mrf.mxu0
  %875 = vmatprep.mubr.bf16.mxu0 %v660
  %876 = vmatmul.mubr.bf16.gmra.mxu0 %v659
  %v877 = vpop.f32.mrf.mxu0
  %v878 = vadd.f32 0.0, %v877
  %v879 = vpop.f32.mrf.mxu0
  %v880 = vpop.f32.mrf.mxu0
  %v881 = vadd.f32 0.0, %v880
  %v882 = vpop.f32.mrf.mxu0
  %883 = vmatprep.mubr.bf16.mxu0 %v662
  %884 = vmatmul.mubr.bf16.gmra.mxu0 %v661
  %v885 = vpop.f32.mrf.mxu0
  %v886 = vadd.f32 0.0, %v885
  %v887 = vpop.f32.mrf.mxu0
  %v888 = vpop.f32.mrf.mxu0
  %v889 = vadd.f32 0.0, %v888
  %v890 = vpop.f32.mrf.mxu0
  %891 = vmatprep.mubr.bf16.mxu0 %v664
  %892 = vmatmul.mubr.bf16.gmra.mxu0 %v663
  %v893 = vpop.f32.mrf.mxu0
  %v894 = vadd.f32 0.0, %v893
  %v895 = vpop.f32.mrf.mxu0
  %v896 = vpop.f32.mrf.mxu0
  %v897 = vadd.f32 0.0, %v896
  %v898 = vpop.f32.mrf.mxu0
  %899 = vmatprep.mubr.bf16.mxu0 %v666
  %900 = vmatmul.mubr.bf16.gmra.mxu0 %v665
  %v901 = vpop.f32.mrf.mxu0
  %v902 = vadd.f32 0.0, %v901
  %v903 = vpop.f32.mrf.mxu0
  %v904 = vpop.f32.mrf.mxu0
  %v905 = vadd.f32 0.0, %v904
  %v906 = vpop.f32.mrf.mxu0
  %907 = vmatprep.mubr.bf16.mxu0 %v668
  %908 = vmatmul.mubr.bf16.gmra.mxu0 %v667
  %v909 = vpop.f32.mrf.mxu0
  %v910 = vadd.f32 0.0, %v909
  %v911 = vpop.f32.mrf.mxu0
  %v912 = vpop.f32.mrf.mxu0
  %v913 = vadd.f32 0.0, %v912
  %v914 = vpop.f32.mrf.mxu0
  %915 = vmatprep.mubr.bf16.mxu0 %v670
  %916 = vmatmul.mubr.bf16.gmra.mxu0 %v669
  %v917 = vpop.f32.mrf.mxu0
  %v918 = vadd.f32 0.0, %v917
  %v919 = vpop.f32.mrf.mxu0
  %v920 = vpop.f32.mrf.mxu0
  %v921 = vadd.f32 0.0, %v920
  %v922 = vpop.f32.mrf.mxu0
  %923 = vmatprep.mubr.bf16.mxu0 %v672
  %924 = vmatmul.mubr.bf16.gmra.mxu0 %v671
  %v925 = vpop.f32.mrf.mxu0
  %v926 = vadd.f32 0.0, %v925
  %v927 = vpop.f32.mrf.mxu0
  %v928 = vpop.f32.mrf.mxu0
  %v929 = vadd.f32 0.0, %v928
  %v930 = vpop.f32.mrf.mxu0
  %931 = vmatprep.mubr.bf16.mxu0 %v674
  %932 = vmatmul.mubr.bf16.gmra.mxu0 %v673
  %v933 = vpop.f32.mrf.mxu0
  %v934 = vadd.f32 0.0, %v933
  %v935 = vpop.f32.mrf.mxu0
  %v936 = vpop.f32.mrf.mxu0
  %v937 = vadd.f32 0.0, %v936
  %v938 = vpop.f32.mrf.mxu0
  %939 = vmatprep.mubr.bf16.mxu0 %v676
  %940 = vmatmul.mubr.bf16.gmra.mxu0 %v675
  %v941 = vpop.f32.mrf.mxu0
  %v942 = vadd.f32 0.0, %v941
  %v943 = vpop.f32.mrf.mxu0
  %v944 = vpop.f32.mrf.mxu0
  %v945 = vadd.f32 0.0, %v944
  %v946 = vpop.f32.mrf.mxu0
  %947 = vmatprep.mubr.bf16.mxu0 %v678
  %948 = vmatmul.mubr.bf16.gmra.mxu0 %v677
  %v949 = vpop.f32.mrf.mxu0
  %v950 = vadd.f32 0.0, %v949
  %v951 = vpop.f32.mrf.mxu0
  %v952 = vpop.f32.mrf.mxu0
  %v953 = vadd.f32 0.0, %v952
  %v954 = vpop.f32.mrf.mxu0
  %955 = vmatprep.mubr.bf16.mxu0 %v680
  %956 = vmatmul.mubr.bf16.gmra.mxu0 %v679
  %v957 = vpop.f32.mrf.mxu0
  %v958 = vadd.f32 0.0, %v957
  %v959 = vpop.f32.mrf.mxu0
  %v960 = vpop.f32.mrf.mxu0
  %v961 = vadd.f32 0.0, %v960
  %v962 = vpop.f32.mrf.mxu0
  %963 = vmatprep.mubr.bf16.mxu0 %v682
  %964 = vmatmul.mubr.bf16.gmra.mxu0 %v681
  %v965 = vpop.f32.mrf.mxu0
  %v966 = vadd.f32 0.0, %v965
  %v967 = vpop.f32.mrf.mxu0
  %v968 = vpop.f32.mrf.mxu0
  %v969 = vadd.f32 0.0, %v968
  %v970 = vpop.f32.mrf.mxu0
  %971 = vdwg.mxu0
  %v972 = vadd.f32 %v491, %v846
  %v973 = vadd.f32 %v492, %v849
  %v974 = vadd.f32 %v493, %v854
  %v975 = vadd.f32 %v494, %v857
  %v976 = vadd.f32 %v495, %v862
  %v977 = vadd.f32 %v496, %v865
  %v978 = vadd.f32 %v497, %v870
  %v979 = vadd.f32 %v498, %v873
  %v980 = vadd.f32 %v499, %v878
  %v981 = vadd.f32 %v500, %v881
  %v982 = vadd.f32 %v501, %v886
  %v983 = vadd.f32 %v502, %v889
  %v984 = vadd.f32 %v503, %v894
  %v985 = vadd.f32 %v504, %v897
  %v986 = vadd.f32 %v505, %v902
  %v987 = vadd.f32 %v506, %v905
  %v988 = vadd.f32 %v507, %v910
  %v989 = vadd.f32 %v508, %v913
  %v990 = vadd.f32 %v509, %v918
  %v991 = vadd.f32 %v510, %v921
  %v992 = vadd.f32 %v511, %v926
  %v993 = vadd.f32 %v512, %v929
  %v994 = vadd.f32 %v513, %v934
  %v995 = vadd.f32 %v514, %v937
  %v996 = vadd.f32 %v515, %v942
  %v997 = vadd.f32 %v516, %v945
  %v998 = vadd.f32 %v517, %v950
  %v999 = vadd.f32 %v518, %v953
  %v1000 = vadd.f32 %v519, %v958
  %v1001 = vadd.f32 %v520, %v961
  %v1002 = vadd.f32 %v521, %v966
  %v1003 = vadd.f32 %v522, %v969
  %1004 = vst [vmem:[%s5] sm:$0xff] %v972
  %1005 = vst [vmem:[%s5 + $0x8] sm:$0xff] %v973
  %1006 = vst [vmem:[%s5 + $0x10] sm:$0xff] %v974
  %1007 = vst [vmem:[%s5 + $0x18] sm:$0xff] %v975
  %1008 = vst [vmem:[%s5 + $0x20] sm:$0xff] %v976
  %1009 = vst [vmem:[%s5 + $0x28] sm:$0xff] %v977
  %1010 = vst [vmem:[%s5 + $0x30] sm:$0xff] %v978
  %1011 = vst [vmem:[%s5 + $0x38] sm:$0xff] %v979
  %1012 = vst [vmem:[%s5 + $0x40] sm:$0xff] %v980
  %1013 = vst [vmem:[%s5 + $0x48] sm:$0xff] %v981
  %1014 = vst [vmem:[%s5 + $0x50] sm:$0xff] %v982
  %1015 = vst [vmem:[%s5 + $0x58] sm:$0xff] %v983
  %1016 = vst [vmem:[%s5 + $0x60] sm:$0xff] %v984
  %1017 = vst [vmem:[%s5 + $0x68] sm:$0xff] %v985
  %1018 = vst [vmem:[%s5 + $0x70] sm:$0xff] %v986
  %1019 = vst [vmem:[%s5 + $0x78] sm:$0xff] %v987
  %1020 = vst [vmem:[%s5 + $0x80] sm:$0xff] %v988
  %1021 = vst [vmem:[%s5 + $0x88] sm:$0xff] %v989
  %1022 = vst [vmem:[%s5 + $0x90] sm:$0xff] %v990
  %1023 = vst [vmem:[%s5 + $0x98] sm:$0xff] %v991
  %1024 = vst [vmem:[%s5 + $0xa0] sm:$0xff] %v992
  %1025 = vst [vmem:[%s5 + $0xa8] sm:$0xff] %v993
  %1026 = vst [vmem:[%s5 + $0xb0] sm:$0xff] %v994
  %1027 = vst [vmem:[%s5 + $0xb8] sm:$0xff] %v995
  %1028 = vst [vmem:[%s5 + $0xc0] sm:$0xff] %v996
  %1029 = vst [vmem:[%s5 + $0xc8] sm:$0xff] %v997
  %1030 = vst [vmem:[%s5 + $0xd0] sm:$0xff] %v998
  %1031 = vst [vmem:[%s5 + $0xd8] sm:$0xff] %v999
  %1032 = vst [vmem:[%s5 + $0xe0] sm:$0xff] %v1000
  %1033 = vst [vmem:[%s5 + $0xe8] sm:$0xff] %v1001
  %1034 = vst [vmem:[%s5 + $0xf0] sm:$0xff] %v1002
  %1035 = vst [vmem:[%s5 + $0xf8] sm:$0xff] %v1003
  // Predicated region
  $region26: #{sun_layer_forward.1} parent=0 // pred_check
    _
  $region27: #{sun_layer_forward.1} parent=0 // pred_check_branch
    %1037 = sbr.rel (0) target = $region29
  $region28: #{sun_layer_forward.1} parent=0 // pred_region
    _
  $region29: #{sun_layer_forward.1} parent=0 // pred_fallthru
    _
  // Predicated region
  $region30: #{sun_layer_forward.1} parent=0 // pred_check
    _
  $region31: #{sun_layer_forward.1} parent=0 // pred_check_branch
    %1039 = sbr.rel (0) target = $region33
  $region32: #{sun_layer_forward.1} parent=0 // pred_region
    _
  $region33: #{sun_layer_forward.1} parent=0 // pred_fallthru
    _

// kernel: sun_layer_forward.1
$region0: #{sun_layer_forward.1}
  #allocation0 [shape = 'u32[]', space=smem, size = 0x4, offset = 0x4, fixed_abs, tag = 'smem constant byte address 0x4 - core index']
  #allocation1 [shape = 'u32[144,128]{1,0:T(1,128)}', space=vmem, size = 0x12000, scoped, tag = 'internal scratch']
  %s0 = inlined_call_operand.vmem [shape: bf16[256,256], index: 0, kind: input, shape index: {}]
  %s1 = inlined_call_operand.vmem [shape: bf16[256,128], index: 1, kind: input, shape index: {}]
  %s2 = inlined_call_operand.vmem [shape: f32[256,33], index: 2, kind: input, shape index: {}]
  %s3 = inlined_call_operand.vmem [shape: f32[33,128], index: 3, kind: input, shape index: {}]
  %s4 = inlined_call_operand.vmem [shape: f32[1,128], index: 4, kind: input, shape index: {}]
  %s5 = inlined_call_operand.vmem [shape: f32[256,128], index: 5, kind: output, shape index: {}]
  %s6 = sld [smem:[#allocation0]]
  $region34: #{sun_layer_forward.1} parent=0
    _
  %s8 = ssub.s32 1, %s6
  %s9 = scalar_select 0, %s8, %s6
  // Predicated region
  $region2: #{sun_layer_forward.1} parent=0 // pred_check
    _
  $region3: #{sun_layer_forward.1} parent=0 // pred_check_branch
    %11 = sbr.rel (0) target = $region5
  $region4: #{sun_layer_forward.1} parent=0 // pred_region
    _
  $region5: #{sun_layer_forward.1} parent=0 // pred_fallthru
    _
  // Predicated region
  $region6: #{sun_layer_forward.1} parent=0 // pred_check
    _
  $region7: #{sun_layer_forward.1} parent=0 // pred_check_branch
    %13 = sbr.rel (0) target = $region9
  $region8: #{sun_layer_forward.1} parent=0 // pred_region
    _
  $region9: #{sun_layer_forward.1} parent=0 // pred_fallthru
    _
  // Predicated region
  $region10: #{sun_layer_forward.1} parent=0 // pred_check
    _
  $region11: #{sun_layer_forward.1} parent=0 // pred_check_branch
    %15 = sbr.rel (0) target = $region13
  $region12: #{sun_layer_forward.1} parent=0 // pred_region
    _
  $region13: #{sun_layer_forward.1} parent=0 // pred_fallthru
    _
  // Predicated region
  $region14: #{sun_layer_forward.1} parent=0 // pred_check
    _
  $region15: #{sun_layer_forward.1} parent=0 // pred_check_branch
    %17 = sbr.rel (0) target = $region17
  $region16: #{sun_layer_forward.1} parent=0 // pred_region
    _
  $region17: #{sun_layer_forward.1} parent=0 // pred_fallthru
    _
  // Predicated region
  $region18: #{sun_layer_forward.1} parent=0 // pred_check
    _
  $region19: #{sun_layer_forward.1} parent=0 // pred_check_branch
    %19 = sbr.rel (0) target = $region21
  $region20: #{sun_layer_forward.1} parent=0 // pred_region
    _
  $region21: #{sun_layer_forward.1} parent=0 // pred_fallthru
    _
  %p21 = scmp.eq.s32.totalorder 0, 0
  // Predicated region
  $region22: #{sun_layer_forward.1} parent=0 // pred_check
    %p22 = pneg %p21
  $region23: #{sun_layer_forward.1} parent=0 // pred_check_branch
    %24 = sbr.rel (%p22) target = $region25
  $region24: #{sun_layer_forward.1} parent=0 // pred_region
    %v25 = vld [vmem:[%s2] sm:$0xff]
    %v26 = vld [vmem:[%s2 + $0x8] sm:$0xff]
    %v27 = vld [vmem:[%s2 + $0x10] sm:$0xff]
    %v28 = vld [vmem:[%s2 + $0x18] sm:$0xff]
    %v29 = vld [vmem:[%s2 + $0x20] sm:$0xff]
    %v30 = vld [vmem:[%s2 + $0x28] sm:$0xff]
    %v31 = vld [vmem:[%s2 + $0x30] sm:$0xff]
    %v32 = vld [vmem:[%s2 + $0x38] sm:$0xff]
    %v33 = vld [vmem:[%s2 + $0x40] sm:$0xff]
    %v34 = vld [vmem:[%s2 + $0x48] sm:$0xff]
    %v35 = vld [vmem:[%s2 + $0x50] sm:$0xff]
    %v36 = vld [vmem:[%s2 + $0x58] sm:$0xff]
    %v37 = vld [vmem:[%s2 + $0x60] sm:$0xff]
    %v38 = vld [vmem:[%s2 + $0x68] sm:$0xff]
    %v39 = vld [vmem:[%s2 + $0x70] sm:$0xff]
    %v40 = vld [vmem:[%s2 + $0x78] sm:$0xff]
    %v41 = vld [vmem:[%s2 + $0x80] sm:$0xff]
    %v42 = vld [vmem:[%s2 + $0x88] sm:$0xff]
    %v43 = vld [vmem:[%s2 + $0x90] sm:$0xff]
    %v44 = vld [vmem:[%s2 + $0x98] sm:$0xff]
    %v45 = vld [vmem:[%s2 + $0xa0] sm:$0xff]
    %v46 = vld [vmem:[%s2 + $0xa8] sm:$0xff]
    %v47 = vld [vmem:[%s2 + $0xb0] sm:$0xff]
    %v48 = vld [vmem:[%s2 + $0xb8] sm:$0xff]
    %v49 = vld [vmem:[%s2 + $0xc0] sm:$0xff]
    %v50 = vld [vmem:[%s2 + $0xc8] sm:$0xff]
    %v51 = vld [vmem:[%s2 + $0xd0] sm:$0xff]
    %v52 = vld [vmem:[%s2 + $0xd8] sm:$0xff]
    %v53 = vld [vmem:[%s2 + $0xe0] sm:$0xff]
    %v54 = vld [vmem:[%s2 + $0xe8] sm:$0xff]
    %v55 = vld [vmem:[%s2 + $0xf0] sm:$0xff]
    %v56 = vld [vmem:[%s2 + $0xf8] sm:$0xff]
    %v57 = vld [vmem:[%s3] sm:$0xff]
    %v58 = vld [vmem:[%s3 + $0x8] sm:$0xff]
    %v59 = vld [vmem:[%s3 + $0x10] sm:$0xff]
    %v60 = vld [vmem:[%s3 + $0x18] sm:$0xff]
    %v61 = vld [vmem:[%s3 + $0x20] sm:$0x1]
    %v62 = vld [vmem:[%s4] sm:$0x1]
    %v64 = vlaneseq
    %v65 = vshrl.u32 %v64, 7
    %v66 = vsub.s32 0, %v65
    %v67 = vrot.slane %v62, %v66
    %vm69 = vcmask 269312
    %v71 = vsel %vm69, %v25, 0
    %v74 = vsel %vm69, %v26, 0
    %v77 = vsel %vm69, %v27, 0
    %v80 = vsel %vm69, %v28, 0
    %v83 = vsel %vm69, %v29, 0
    %v86 = vsel %vm69, %v30, 0
    %v89 = vsel %vm69, %v31, 0
    %v92 = vsel %vm69, %v32, 0
    %v95 = vsel %vm69, %v33, 0
    %v98 = vsel %vm69, %v34, 0
    %v101 = vsel %vm69, %v35, 0
    %v104 = vsel %vm69, %v36, 0
    %v107 = vsel %vm69, %v37, 0
    %v110 = vsel %vm69, %v38, 0
    %v113 = vsel %vm69, %v39, 0
    %v116 = vsel %vm69, %v40, 0
    %v119 = vsel %vm69, %v41, 0
    %v122 = vsel %vm69, %v42, 0
    %v125 = vsel %vm69, %v43, 0
    %v128 = vsel %vm69, %v44, 0
    %v131 = vsel %vm69, %v45, 0
    %v134 = vsel %vm69, %v46, 0
    %v137 = vsel %vm69, %v47, 0
    %v140 = vsel %vm69, %v48, 0
    %v143 = vsel %vm69, %v49, 0
    %v146 = vsel %vm69, %v50, 0
    %v149 = vsel %vm69, %v51, 0
    %v152 = vsel %vm69, %v52, 0
    %v155 = vsel %vm69, %v53, 0
    %v158 = vsel %vm69, %v54, 0
    %v161 = vsel %vm69, %v55, 0
    %v164 = vsel %vm69, %v56, 0
    %vm166 = vcmask 1040384
    %v168 = vsel %vm166, %v61, 0
    %170 = vmatprep.subr.mxu0 0.0
    %171 = vmatpush1.msra.mxu0 0.0
    %172 = vmatprep.subr.mxu0 0.0
    %173 = vmatpush1.msra.mxu0 0.0
    %174 = vmatprep.subr.mxu0 0.0
    %175 = vmatpush1.msra.mxu0 0.0
    %176 = vmatprep.subr.mxu0 0.0
    %177 = vmatpush1.msra.mxu0 0.0
    %178 = vmatprep.subr.mxu0 0.0
    %179 = vmatpush1.msra.mxu0 0.0
    %180 = vmatprep.subr.mxu0 0.0
    %181 = vmatpush1.msra.mxu0 0.0
    %182 = vmatprep.subr.mxu0 0.0
    %183 = vmatpush1.msra.mxu0 0.0
    %184 = vmatprep.subr.mxu0 0.0
    %185 = vmatpush1.msra.mxu0 0.0
    %186 = vmatprep.subr.mxu0 0.0
    %187 = vmatpush1.msra.mxu0 0.0
    %188 = vmatprep.subr.mxu0 0.0
    %189 = vmatpush1.msra.mxu0 0.0
    %190 = vmatprep.subr.mxu0 0.0
    %191 = vmatpush1.msra.mxu0 0.0
    %192 = vmatprep.subr.mxu0 0.0
    %193 = vmatpush1.msra.mxu0 %v168
    %194 = vmatprep.subr.mxu0 0.0
    %195 = vmatpush1.msra.mxu0 %v60
    %196 = vmatprep.subr.mxu0 0.0
    %197 = vmatpush1.msra.mxu0 %v59
    %198 = vmatprep.subr.mxu0 0.0
    %199 = vmatpush1.msra.mxu0 %v58
    %200 = vmatprep.subr.mxu0 0.0
    %201 = vmatpush1.msra.mxu0 %v57
    %202 = vmatprep.subr.mxu0 0.0
    %203 = vmatpush2.msra.mxu0 0.0
    %204 = vmatprep.subr.mxu0 0.0
    %205 = vmatpush2.msra.mxu0 0.0
    %206 = vmatprep.subr.mxu0 0.0
    %207 = vmatpush2.msra.mxu0 0.0
    %208 = vmatprep.subr.mxu0 0.0
    %209 = vmatpush2.msra.mxu0 0.0
    %210 = vmatprep.subr.mxu0 0.0
    %211 = vmatpush2.msra.mxu0 0.0
    %212 = vmatprep.subr.mxu0 0.0
    %213 = vmatpush2.msra.mxu0 0.0
    %214 = vmatprep.subr.mxu0 0.0
    %215 = vmatpush2.msra.mxu0 0.0
    %216 = vmatprep.subr.mxu0 0.0
    %217 = vmatpush2.msra.mxu0 0.0
    %218 = vmatprep.subr.mxu0 0.0
    %219 = vmatpush2.msra.mxu0 0.0
    %220 = vmatprep.subr.mxu0 0.0
    %221 = vmatpush2.msra.mxu0 0.0
    %222 = vmatprep.subr.mxu0 0.0
    %223 = vmatpush2.msra.mxu0 0.0
    %224 = vmatprep.subr.mxu0 0.0
    %225 = vmatpush2.msra.mxu0 0.0
    %226 = vmatprep.subr.mxu0 0.0
    %227 = vmatpush2.msra.mxu0 0.0
    %228 = vmatprep.subr.mxu0 0.0
    %229 = vmatpush2.msra.mxu0 0.0
    %230 = vmatprep.subr.mxu0 0.0
    %231 = vmatpush2.msra.mxu0 0.0
    %232 = vmatprep.subr.mxu0 0.0
    %233 = vmatpush2.msra.mxu0 0.0
    %234 = vmatprep.mubr.f32.mxu0 0.0
    %235 = vmatmul.mubr.f32.gmra.mxu0 %v71
    %v236 = vpop.f32.mrf.mxu0
    %v237 = vadd.f32 %v67, %v236
    %v238 = vpop.f32.mrf.mxu0
    %239 = vmatprep.mubr.f32.mxu0 0.0
    %240 = vmatmul.mubr.f32.gmra.mxu0 %v74
    %v241 = vpop.f32.mrf.mxu0
    %v242 = vadd.f32 %v67, %v241
    %v243 = vpop.f32.mrf.mxu0
    %244 = vmatprep.mubr.f32.mxu0 0.0
    %245 = vmatmul.mubr.f32.gmra.mxu0 %v77
    %v246 = vpop.f32.mrf.mxu0
    %v247 = vadd.f32 %v67, %v246
    %v248 = vpop.f32.mrf.mxu0
    %249 = vmatprep.mubr.f32.mxu0 0.0
    %250 = vmatmul.mubr.f32.gmra.mxu0 %v80
    %v251 = vpop.f32.mrf.mxu0
    %v252 = vadd.f32 %v67, %v251
    %v253 = vpop.f32.mrf.mxu0
    %254 = vmatprep.mubr.f32.mxu0 0.0
    %255 = vmatmul.mubr.f32.gmra.mxu0 %v83
    %v256 = vpop.f32.mrf.mxu0
    %v257 = vadd.f32 %v67, %v256
    %v258 = vpop.f32.mrf.mxu0
    %259 = vmatprep.mubr.f32.mxu0 0.0
    %260 = vmatmul.mubr.f32.gmra.mxu0 %v86
    %v261 = vpop.f32.mrf.mxu0
    %v262 = vadd.f32 %v67, %v261
    %v263 = vpop.f32.mrf.mxu0
    %264 = vmatprep.mubr.f32.mxu0 0.0
    %265 = vmatmul.mubr.f32.gmra.mxu0 %v89
    %v266 = vpop.f32.mrf.mxu0
    %v267 = vadd.f32 %v67, %v266
    %v268 = vpop.f32.mrf.mxu0
    %269 = vmatprep.mubr.f32.mxu0 0.0
    %270 = vmatmul.mubr.f32.gmra.mxu0 %v92
    %v271 = vpop.f32.mrf.mxu0
    %v272 = vadd.f32 %v67, %v271
    %v273 = vpop.f32.mrf.mxu0
    %274 = vmatprep.mubr.f32.mxu0 0.0
    %275 = vmatmul.mubr.f32.gmra.mxu0 %v95
    %v276 = vpop.f32.mrf.mxu0
    %v277 = vadd.f32 %v67, %v276
    %v278 = vpop.f32.mrf.mxu0
    %279 = vmatprep.mubr.f32.mxu0 0.0
    %280 = vmatmul.mubr.f32.gmra.mxu0 %v98
    %v281 = vpop.f32.mrf.mxu0
    %v282 = vadd.f32 %v67, %v281
    %v283 = vpop.f32.mrf.mxu0
    %284 = vmatprep.mubr.f32.mxu0 0.0
    %285 = vmatmul.mubr.f32.gmra.mxu0 %v101
    %v286 = vpop.f32.mrf.mxu0
    %v287 = vadd.f32 %v67, %v286
    %v288 = vpop.f32.mrf.mxu0
    %289 = vmatprep.mubr.f32.mxu0 0.0
    %290 = vmatmul.mubr.f32.gmra.mxu0 %v104
    %v291 = vpop.f32.mrf.mxu0
    %v292 = vadd.f32 %v67, %v291
    %v293 = vpop.f32.mrf.mxu0
    %294 = vmatprep.mubr.f32.mxu0 0.0
    %295 = vmatmul.mubr.f32.gmra.mxu0 %v107
    %v296 = vpop.f32.mrf.mxu0
    %v297 = vadd.f32 %v67, %v296
    %v298 = vpop.f32.mrf.mxu0
    %299 = vmatprep.mubr.f32.mxu0 0.0
    %300 = vmatmul.mubr.f32.gmra.mxu0 %v110
    %v301 = vpop.f32.mrf.mxu0
    %v302 = vadd.f32 %v67, %v301
    %v303 = vpop.f32.mrf.mxu0
    %304 = vmatprep.mubr.f32.mxu0 0.0
    %305 = vmatmul.mubr.f32.gmra.mxu0 %v113
    %v306 = vpop.f32.mrf.mxu0
    %v307 = vadd.f32 %v67, %v306
    %v308 = vpop.f32.mrf.mxu0
    %309 = vmatprep.mubr.f32.mxu0 0.0
    %310 = vmatmul.mubr.f32.gmra.mxu0 %v116
    %v311 = vpop.f32.mrf.mxu0
    %v312 = vadd.f32 %v67, %v311
    %v313 = vpop.f32.mrf.mxu0
    %314 = vmatprep.mubr.f32.mxu0 0.0
    %315 = vmatmul.mubr.f32.gmra.mxu0 %v119
    %v316 = vpop.f32.mrf.mxu0
    %v317 = vadd.f32 %v67, %v316
    %v318 = vpop.f32.mrf.mxu0
    %319 = vmatprep.mubr.f32.mxu0 0.0
    %320 = vmatmul.mubr.f32.gmra.mxu0 %v122
    %v321 = vpop.f32.mrf.mxu0
    %v322 = vadd.f32 %v67, %v321
    %v323 = vpop.f32.mrf.mxu0
    %324 = vmatprep.mubr.f32.mxu0 0.0
    %325 = vmatmul.mubr.f32.gmra.mxu0 %v125
    %v326 = vpop.f32.mrf.mxu0
    %v327 = vadd.f32 %v67, %v326
    %v328 = vpop.f32.mrf.mxu0
    %329 = vmatprep.mubr.f32.mxu0 0.0
    %330 = vmatmul.mubr.f32.gmra.mxu0 %v128
    %v331 = vpop.f32.mrf.mxu0
    %v332 = vadd.f32 %v67, %v331
    %v333 = vpop.f32.mrf.mxu0
    %334 = vmatprep.mubr.f32.mxu0 0.0
    %335 = vmatmul.mubr.f32.gmra.mxu0 %v131
    %v336 = vpop.f32.mrf.mxu0
    %v337 = vadd.f32 %v67, %v336
    %v338 = vpop.f32.mrf.mxu0
    %339 = vmatprep.mubr.f32.mxu0 0.0
    %340 = vmatmul.mubr.f32.gmra.mxu0 %v134
    %v341 = vpop.f32.mrf.mxu0
    %v342 = vadd.f32 %v67, %v341
    %v343 = vpop.f32.mrf.mxu0
    %344 = vmatprep.mubr.f32.mxu0 0.0
    %345 = vmatmul.mubr.f32.gmra.mxu0 %v137
    %v346 = vpop.f32.mrf.mxu0
    %v347 = vadd.f32 %v67, %v346
    %v348 = vpop.f32.mrf.mxu0
    %349 = vmatprep.mubr.f32.mxu0 0.0
    %350 = vmatmul.mubr.f32.gmra.mxu0 %v140
    %v351 = vpop.f32.mrf.mxu0
    %v352 = vadd.f32 %v67, %v351
    %v353 = vpop.f32.mrf.mxu0
    %354 = vmatprep.mubr.f32.mxu0 0.0
    %355 = vmatmul.mubr.f32.gmra.mxu0 %v143
    %v356 = vpop.f32.mrf.mxu0
    %v357 = vadd.f32 %v67, %v356
    %v358 = vpop.f32.mrf.mxu0
    %359 = vmatprep.mubr.f32.mxu0 0.0
    %360 = vmatmul.mubr.f32.gmra.mxu0 %v146
    %v361 = vpop.f32.mrf.mxu0
    %v362 = vadd.f32 %v67, %v361
    %v363 = vpop.f32.mrf.mxu0
    %364 = vmatprep.mubr.f32.mxu0 0.0
    %365 = vmatmul.mubr.f32.gmra.mxu0 %v149
    %v366 = vpop.f32.mrf.mxu0
    %v367 = vadd.f32 %v67, %v366
    %v368 = vpop.f32.mrf.mxu0
    %369 = vmatprep.mubr.f32.mxu0 0.0
    %370 = vmatmul.mubr.f32.gmra.mxu0 %v152
    %v371 = vpop.f32.mrf.mxu0
    %v372 = vadd.f32 %v67, %v371
    %v373 = vpop.f32.mrf.mxu0
    %374 = vmatprep.mubr.f32.mxu0 0.0
    %375 = vmatmul.mubr.f32.gmra.mxu0 %v155
    %v376 = vpop.f32.mrf.mxu0
    %v377 = vadd.f32 %v67, %v376
    %v378 = vpop.f32.mrf.mxu0
    %379 = vmatprep.mubr.f32.mxu0 0.0
    %380 = vmatmul.mubr.f32.gmra.mxu0 %v158
    %v381 = vpop.f32.mrf.mxu0
    %v382 = vadd.f32 %v67, %v381
    %v383 = vpop.f32.mrf.mxu0
    %384 = vmatprep.mubr.f32.mxu0 0.0
    %385 = vmatmul.mubr.f32.gmra.mxu0 %v161
    %v386 = vpop.f32.mrf.mxu0
    %v387 = vadd.f32 %v67, %v386
    %v388 = vpop.f32.mrf.mxu0
    %389 = vmatprep.mubr.f32.mxu0 0.0
    %390 = vmatmul.mubr.f32.gmra.mxu0 %v164
    %v391 = vpop.f32.mrf.mxu0
    %v392 = vadd.f32 %v67, %v391
    %v393 = vpop.f32.mrf.mxu0
    %394 = vdwg.mxu0
    %395 = vst [vmem:[%s5] sm:$0xff] %v237
    %396 = vst [vmem:[%s5 + $0x8] sm:$0xff] %v242
    %397 = vst [vmem:[%s5 + $0x10] sm:$0xff] %v247
    %398 = vst [vmem:[%s5 + $0x18] sm:$0xff] %v252
    %399 = vst [vmem:[%s5 + $0x20] sm:$0xff] %v257
    %400 = vst [vmem:[%s5 + $0x28] sm:$0xff] %v262
    %401 = vst [vmem:[%s5 + $0x30] sm:$0xff] %v267
    %402 = vst [vmem:[%s5 + $0x38] sm:$0xff] %v272
    %403 = vst [vmem:[%s5 + $0x40] sm:$0xff] %v277
    %404 = vst [vmem:[%s5 + $0x48] sm:$0xff] %v282
    %405 = vst [vmem:[%s5 + $0x50] sm:$0xff] %v287
    %406 = vst [vmem:[%s5 + $0x58] sm:$0xff] %v292
    %407 = vst [vmem:[%s5 + $0x60] sm:$0xff] %v297
    %408 = vst [vmem:[%s5 + $0x68] sm:$0xff] %v302
    %409 = vst [vmem:[%s5 + $0x70] sm:$0xff] %v307
    %410 = vst [vmem:[%s5 + $0x78] sm:$0xff] %v312
    %411 = vst [vmem:[%s5 + $0x80] sm:$0xff] %v317
    %412 = vst [vmem:[%s5 + $0x88] sm:$0xff] %v322
    %413 = vst [vmem:[%s5 + $0x90] sm:$0xff] %v327
    %414 = vst [vmem:[%s5 + $0x98] sm:$0xff] %v332
    %415 = vst [vmem:[%s5 + $0xa0] sm:$0xff] %v337
    %416 = vst [vmem:[%s5 + $0xa8] sm:$0xff] %v342
    %417 = vst [vmem:[%s5 + $0xb0] sm:$0xff] %v347
    %418 = vst [vmem:[%s5 + $0xb8] sm:$0xff] %v352
    %419 = vst [vmem:[%s5 + $0xc0] sm:$0xff] %v357
    %420 = vst [vmem:[%s5 + $0xc8] sm:$0xff] %v362
    %421 = vst [vmem:[%s5 + $0xd0] sm:$0xff] %v367
    %422 = vst [vmem:[%s5 + $0xd8] sm:$0xff] %v372
    %423 = vst [vmem:[%s5 + $0xe0] sm:$0xff] %v377
    %424 = vst [vmem:[%s5 + $0xe8] sm:$0xff] %v382
    %425 = vst [vmem:[%s5 + $0xf0] sm:$0xff] %v387
    %426 = vst [vmem:[%s5 + $0xf8] sm:$0xff] %v392
  $region25: #{sun_layer_forward.1} parent=0 // pred_fallthru
    _
  %v427 = vld [vmem:[%s0] sm:$0xff]
  %v428 = vld [vmem:[%s0 + $0x8] sm:$0xff]
  %v429 = vld [vmem:[%s0 + $0x10] sm:$0xff]
  %v430 = vld [vmem:[%s0 + $0x18] sm:$0xff]
  %v431 = vld [vmem:[%s0 + $0x20] sm:$0xff]
  %v432 = vld [vmem:[%s0 + $0x28] sm:$0xff]
  %v433 = vld [vmem:[%s0 + $0x30] sm:$0xff]
  %v434 = vld [vmem:[%s0 + $0x38] sm:$0xff]
  %v435 = vld [vmem:[%s0 + $0x40] sm:$0xff]
  %v436 = vld [vmem:[%s0 + $0x48] sm:$0xff]
  %v437 = vld [vmem:[%s0 + $0x50] sm:$0xff]
  %v438 = vld [vmem:[%s0 + $0x58] sm:$0xff]
  %v439 = vld [vmem:[%s0 + $0x60] sm:$0xff]
  %v440 = vld [vmem:[%s0 + $0x68] sm:$0xff]
  %v441 = vld [vmem:[%s0 + $0x70] sm:$0xff]
  %v442 = vld [vmem:[%s0 + $0x78] sm:$0xff]
  %v443 = vld [vmem:[%s0 + $0x80] sm:$0xff]
  %v444 = vld [vmem:[%s0 + $0x88] sm:$0xff]
  %v445 = vld [vmem:[%s0 + $0x90] sm:$0xff]
  %v446 = vld [vmem:[%s0 + $0x98] sm:$0xff]
  %v447 = vld [vmem:[%s0 + $0xa0] sm:$0xff]
  %v448 = vld [vmem:[%s0 + $0xa8] sm:$0xff]
  %v449 = vld [vmem:[%s0 + $0xb0] sm:$0xff]
  %v450 = vld [vmem:[%s0 + $0xb8] sm:$0xff]
  %v451 = vld [vmem:[%s0 + $0xc0] sm:$0xff]
  %v452 = vld [vmem:[%s0 + $0xc8] sm:$0xff]
  %v453 = vld [vmem:[%s0 + $0xd0] sm:$0xff]
  %v454 = vld [vmem:[%s0 + $0xd8] sm:$0xff]
  %v455 = vld [vmem:[%s0 + $0xe0] sm:$0xff]
  %v456 = vld [vmem:[%s0 + $0xe8] sm:$0xff]
  %v457 = vld [vmem:[%s0 + $0xf0] sm:$0xff]
  %v458 = vld [vmem:[%s0 + $0xf8] sm:$0xff]
  %v459 = vld [vmem:[%s5] sm:$0xff]
  %v460 = vld [vmem:[%s5 + $0x8] sm:$0xff]
  %v461 = vld [vmem:[%s5 + $0x10] sm:$0xff]
  %v462 = vld [vmem:[%s5 + $0x18] sm:$0xff]
  %v463 = vld [vmem:[%s5 + $0x20] sm:$0xff]
  %v464 = vld [vmem:[%s5 + $0x28] sm:$0xff]
  %v465 = vld [vmem:[%s5 + $0x30] sm:$0xff]
  %v466 = vld [vmem:[%s5 + $0x38] sm:$0xff]
  %v467 = vld [vmem:[%s5 + $0x40] sm:$0xff]
  %v468 = vld [vmem:[%s5 + $0x48] sm:$0xff]
  %v469 = vld [vmem:[%s5 + $0x50] sm:$0xff]
  %v470 = vld [vmem:[%s5 + $0x58] sm:$0xff]
  %v471 = vld [vmem:[%s5 + $0x60] sm:$0xff]
  %v472 = vld [vmem:[%s5 + $0x68] sm:$0xff]
  %v473 = vld [vmem:[%s5 + $0x70] sm:$0xff]
  %v474 = vld [vmem:[%s5 + $0x78] sm:$0xff]
  %v475 = vld [vmem:[%s5 + $0x80] sm:$0xff]
  %v476 = vld [vmem:[%s5 + $0x88] sm:$0xff]
  %v477 = vld [vmem:[%s5 + $0x90] sm:$0xff]
  %v478 = vld [vmem:[%s5 + $0x98] sm:$0xff]
  %v479 = vld [vmem:[%s5 + $0xa0] sm:$0xff]
  %v480 = vld [vmem:[%s5 + $0xa8] sm:$0xff]
  %v481 = vld [vmem:[%s5 + $0xb0] sm:$0xff]
  %v482 = vld [vmem:[%s5 + $0xb8] sm:$0xff]
  %v483 = vld [vmem:[%s5 + $0xc0] sm:$0xff]
  %v484 = vld [vmem:[%s5 + $0xc8] sm:$0xff]
  %v485 = vld [vmem:[%s5 + $0xd0] sm:$0xff]
  %v486 = vld [vmem:[%s5 + $0xd8] sm:$0xff]
  %v487 = vld [vmem:[%s5 + $0xe0] sm:$0xff]
  %v488 = vld [vmem:[%s5 + $0xe8] sm:$0xff]
  %v489 = vld [vmem:[%s5 + $0xf0] sm:$0xff]
  %v490 = vld [vmem:[%s5 + $0xf8] sm:$0xff]
  %v491 = vld [vmem:[%s1] sm:$0xf]
  %v492 = vld [vmem:[%s1 + $0x4] sm:$0xf]
  %v493 = vld [vmem:[%s1 + $0x8] sm:$0xf]
  %v494 = vld [vmem:[%s1 + $0xc] sm:$0xf]
  %v495 = vld [vmem:[%s1 + $0x10] sm:$0xf]
  %v496 = vld [vmem:[%s1 + $0x14] sm:$0xf]
  %v497 = vld [vmem:[%s1 + $0x18] sm:$0xf]
  %v498 = vld [vmem:[%s1 + $0x1c] sm:$0xf]
  %v499 = vld [vmem:[%s1 + $0x20] sm:$0xf]
  %v500 = vld [vmem:[%s1 + $0x24] sm:$0xf]
  %v501 = vld [vmem:[%s1 + $0x28] sm:$0xf]
  %v502 = vld [vmem:[%s1 + $0x2c] sm:$0xf]
  %v503 = vld [vmem:[%s1 + $0x30] sm:$0xf]
  %v504 = vld [vmem:[%s1 + $0x34] sm:$0xf]
  %v505 = vld [vmem:[%s1 + $0x38] sm:$0xf]
  %v506 = vld [vmem:[%s1 + $0x3c] sm:$0xf]
  %v507 = vld [vmem:[%s1 + $0x40] sm:$0xf]
  %v508 = vld [vmem:[%s1 + $0x44] sm:$0xf]
  %v509 = vld [vmem:[%s1 + $0x48] sm:$0xf]
  %v510 = vld [vmem:[%s1 + $0x4c] sm:$0xf]
  %v511 = vld [vmem:[%s1 + $0x50] sm:$0xf]
  %v512 = vld [vmem:[%s1 + $0x54] sm:$0xf]
  %v513 = vld [vmem:[%s1 + $0x58] sm:$0xf]
  %v514 = vld [vmem:[%s1 + $0x5c] sm:$0xf]
  %v515 = vld [vmem:[%s1 + $0x60] sm:$0xf]
  %v516 = vld [vmem:[%s1 + $0x64] sm:$0xf]
  %v517 = vld [vmem:[%s1 + $0x68] sm:$0xf]
  %v518 = vld [vmem:[%s1 + $0x6c] sm:$0xf]
  %v519 = vld [vmem:[%s1 + $0x70] sm:$0xf]
  %v520 = vld [vmem:[%s1 + $0x74] sm:$0xf]
  %v521 = vld [vmem:[%s1 + $0x78] sm:$0xf]
  %v522 = vld [vmem:[%s1 + $0x7c] sm:$0xf]
  %v555 = vunpack.c.l.b16 %v427
  %v556 = vunpack.c.h.b16 %v427
  %v557 = vunpack.c.l.b16 %v428
  %v558 = vunpack.c.h.b16 %v428
  %v559 = vunpack.c.l.b16 %v429
  %v560 = vunpack.c.h.b16 %v429
  %v561 = vunpack.c.l.b16 %v430
  %v562 = vunpack.c.h.b16 %v430
  %v563 = vunpack.c.l.b16 %v431
  %v564 = vunpack.c.h.b16 %v431
  %v565 = vunpack.c.l.b16 %v432
  %v566 = vunpack.c.h.b16 %v432
  %v567 = vunpack.c.l.b16 %v433
  %v568 = vunpack.c.h.b16 %v433
  %v569 = vunpack.c.l.b16 %v434
  %v570 = vunpack.c.h.b16 %v434
  %v571 = vunpack.c.l.b16 %v435
  %v572 = vunpack.c.h.b16 %v435
  %v573 = vunpack.c.l.b16 %v436
  %v574 = vunpack.c.h.b16 %v436
  %v575 = vunpack.c.l.b16 %v437
  %v576 = vunpack.c.h.b16 %v437
  %v577 = vunpack.c.l.b16 %v438
  %v578 = vunpack.c.h.b16 %v438
  %v579 = vunpack.c.l.b16 %v439
  %v580 = vunpack.c.h.b16 %v439
  %v581 = vunpack.c.l.b16 %v440
  %v582 = vunpack.c.h.b16 %v440
  %v583 = vunpack.c.l.b16 %v441
  %v584 = vunpack.c.h.b16 %v441
  %v585 = vunpack.c.l.b16 %v442
  %v586 = vunpack.c.h.b16 %v442
  %v587 = vunpack.c.l.b16 %v443
  %v588 = vunpack.c.h.b16 %v443
  %v589 = vunpack.c.l.b16 %v444
  %v590 = vunpack.c.h.b16 %v444
  %v591 = vunpack.c.l.b16 %v445
  %v592 = vunpack.c.h.b16 %v445
  %v593 = vunpack.c.l.b16 %v446
  %v594 = vunpack.c.h.b16 %v446
  %v595 = vunpack.c.l.b16 %v447
  %v596 = vunpack.c.h.b16 %v447
  %v597 = vunpack.c.l.b16 %v448
  %v598 = vunpack.c.h.b16 %v448
  %v599 = vunpack.c.l.b16 %v449
  %v600 = vunpack.c.h.b16 %v449
  %v601 = vunpack.c.l.b16 %v450
  %v602 = vunpack.c.h.b16 %v450
  %v603 = vunpack.c.l.b16 %v451
  %v604 = vunpack.c.h.b16 %v451
  %v605 = vunpack.c.l.b16 %v452
  %v606 = vunpack.c.h.b16 %v452
  %v607 = vunpack.c.l.b16 %v453
  %v608 = vunpack.c.h.b16 %v453
  %v609 = vunpack.c.l.b16 %v454
  %v610 = vunpack.c.h.b16 %v454
  %v611 = vunpack.c.l.b16 %v455
  %v612 = vunpack.c.h.b16 %v455
  %v613 = vunpack.c.l.b16 %v456
  %v614 = vunpack.c.h.b16 %v456
  %v615 = vunpack.c.l.b16 %v457
  %v616 = vunpack.c.h.b16 %v457
  %v617 = vunpack.c.l.b16 %v458
  %v618 = vunpack.c.h.b16 %v458
  %v619 = vpack.c.b16 %v557, %v555
  %v620 = vpack.c.b16 %v558, %v556
  %v621 = vpack.c.b16 %v561, %v559
  %v622 = vpack.c.b16 %v562, %v560
  %v623 = vpack.c.b16 %v565, %v563
  %v624 = vpack.c.b16 %v566, %v564
  %v625 = vpack.c.b16 %v569, %v567
  %v626 = vpack.c.b16 %v570, %v568
  %v627 = vpack.c.b16 %v573, %v571
  %v628 = vpack.c.b16 %v574, %v572
  %v629 = vpack.c.b16 %v577, %v575
  %v630 = vpack.c.b16 %v578, %v576
  %v631 = vpack.c.b16 %v581, %v579
  %v632 = vpack.c.b16 %v582, %v580
  %v633 = vpack.c.b16 %v585, %v583
  %v634 = vpack.c.b16 %v586, %v584
  %v635 = vpack.c.b16 %v589, %v587
  %v636 = vpack.c.b16 %v590, %v588
  %v637 = vpack.c.b16 %v593, %v591
  %v638 = vpack.c.b16 %v594, %v592
  %v639 = vpack.c.b16 %v597, %v595
  %v640 = vpack.c.b16 %v598, %v596
  %v641 = vpack.c.b16 %v601, %v599
  %v642 = vpack.c.b16 %v602, %v600
  %v643 = vpack.c.b16 %v605, %v603
  %v644 = vpack.c.b16 %v606, %v604
  %v645 = vpack.c.b16 %v609, %v607
  %v646 = vpack.c.b16 %v610, %v608
  %v647 = vpack.c.b16 %v613, %v611
  %v648 = vpack.c.b16 %v614, %v612
  %v649 = vpack.c.b16 %v617, %v615
  %v650 = vpack.c.b16 %v618, %v616
  %v715 = vunpack.c.l.b16 %v491
  %v716 = vunpack.c.l.b16 %v492
  %v717 = vunpack.c.l.b16 %v493
  %v718 = vunpack.c.l.b16 %v494
  %v719 = vunpack.c.l.b16 %v495
  %v720 = vunpack.c.l.b16 %v496
  %v721 = vunpack.c.l.b16 %v497
  %v722 = vunpack.c.l.b16 %v498
  %v723 = vunpack.c.l.b16 %v499
  %v724 = vunpack.c.l.b16 %v500
  %v725 = vunpack.c.l.b16 %v501
  %v726 = vunpack.c.l.b16 %v502
  %v727 = vunpack.c.l.b16 %v503
  %v728 = vunpack.c.l.b16 %v504
  %v729 = vunpack.c.l.b16 %v505
  %v730 = vunpack.c.l.b16 %v506
  %v731 = vunpack.c.l.b16 %v507
  %v732 = vunpack.c.l.b16 %v508
  %v733 = vunpack.c.l.b16 %v509
  %v734 = vunpack.c.l.b16 %v510
  %v735 = vunpack.c.l.b16 %v511
  %v736 = vunpack.c.l.b16 %v512
  %v737 = vunpack.c.l.b16 %v513
  %v738 = vunpack.c.l.b16 %v514
  %v739 = vunpack.c.l.b16 %v515
  %v740 = vunpack.c.l.b16 %v516
  %v741 = vunpack.c.l.b16 %v517
  %v742 = vunpack.c.l.b16 %v518
  %v743 = vunpack.c.l.b16 %v519
  %v744 = vunpack.c.l.b16 %v520
  %v745 = vunpack.c.l.b16 %v521
  %v746 = vunpack.c.l.b16 %v522
  %v747 = vpack.c.b16 %v716, %v715
  %v748 = vpack.c.b16 %v718, %v717
  %v749 = vpack.c.b16 %v720, %v719
  %v750 = vpack.c.b16 %v722, %v721
  %v751 = vpack.c.b16 %v724, %v723
  %v752 = vpack.c.b16 %v726, %v725
  %v753 = vpack.c.b16 %v728, %v727
  %v754 = vpack.c.b16 %v730, %v729
  %v755 = vpack.c.b16 %v732, %v731
  %v756 = vpack.c.b16 %v734, %v733
  %v757 = vpack.c.b16 %v736, %v735
  %v758 = vpack.c.b16 %v738, %v737
  %v759 = vpack.c.b16 %v740, %v739
  %v760 = vpack.c.b16 %v742, %v741
  %v761 = vpack.c.b16 %v744, %v743
  %v762 = vpack.c.b16 %v746, %v745
  %779 = vmatprep.subr.bf16.mxu0 0
  %780 = vmatpush1.bf16.msra.mxu0 %v754
  %781 = vmatprep.subr.bf16.mxu0 0
  %782 = vmatpush1.bf16.msra.mxu0 %v753
  %783 = vmatprep.subr.bf16.mxu0 0
  %784 = vmatpush1.bf16.msra.mxu0 %v752
  %785 = vmatprep.subr.bf16.mxu0 0
  %786 = vmatpush1.bf16.msra.mxu0 %v751
  %787 = vmatprep.subr.bf16.mxu0 0
  %788 = vmatpush1.bf16.msra.mxu0 %v750
  %789 = vmatprep.subr.bf16.mxu0 0
  %790 = vmatpush1.bf16.msra.mxu0 %v749
  %791 = vmatprep.subr.bf16.mxu0 0
  %792 = vmatpush1.bf16.msra.mxu0 %v748
  %793 = vmatprep.subr.bf16.mxu0 0
  %794 = vmatpush1.bf16.msra.mxu0 %v747
  %795 = vmatprep.subr.bf16.mxu0 0
  %796 = vmatpush2.bf16.msra.mxu0 %v762
  %797 = vmatprep.subr.bf16.mxu0 0
  %798 = vmatpush2.bf16.msra.mxu0 %v761
  %799 = vmatprep.subr.bf16.mxu0 0
  %800 = vmatpush2.bf16.msra.mxu0 %v760
  %801 = vmatprep.subr.bf16.mxu0 0
  %802 = vmatpush2.bf16.msra.mxu0 %v759
  %803 = vmatprep.subr.bf16.mxu0 0
  %804 = vmatpush2.bf16.msra.mxu0 %v758
  %805 = vmatprep.subr.bf16.mxu0 0
  %806 = vmatpush2.bf16.msra.mxu0 %v757
  %807 = vmatprep.subr.bf16.mxu0 0
  %808 = vmatpush2.bf16.msra.mxu0 %v756
  %809 = vmatprep.subr.bf16.mxu0 0
  %810 = vmatpush2.bf16.msra.mxu0 %v755
  %811 = vmatprep.mubr.bf16.mxu0 %v620
  %812 = vmatmul.mubr.bf16.gmra.mxu0 %v619
  %v813 = vpop.f32.mrf.mxu0
  %v814 = vadd.f32 0.0, %v813
  %v815 = vpop.f32.mrf.mxu0
  %v816 = vpop.f32.mrf.mxu0
  %v817 = vadd.f32 0.0, %v816
  %v818 = vpop.f32.mrf.mxu0
  %819 = vmatprep.mubr.bf16.mxu0 %v622
  %820 = vmatmul.mubr.bf16.gmra.mxu0 %v621
  %v821 = vpop.f32.mrf.mxu0
  %v822 = vadd.f32 0.0, %v821
  %v823 = vpop.f32.mrf.mxu0
  %v824 = vpop.f32.mrf.mxu0
  %v825 = vadd.f32 0.0, %v824
  %v826 = vpop.f32.mrf.mxu0
  %827 = vmatprep.mubr.bf16.mxu0 %v624
  %828 = vmatmul.mubr.bf16.gmra.mxu0 %v623
  %v829 = vpop.f32.mrf.mxu0
  %v830 = vadd.f32 0.0, %v829
  %v831 = vpop.f32.mrf.mxu0
  %v832 = vpop.f32.mrf.mxu0
  %v833 = vadd.f32 0.0, %v832
  %v834 = vpop.f32.mrf.mxu0
  %835 = vmatprep.mubr.bf16.mxu0 %v626
  %836 = vmatmul.mubr.bf16.gmra.mxu0 %v625
  %v837 = vpop.f32.mrf.mxu0
  %v838 = vadd.f32 0.0, %v837
  %v839 = vpop.f32.mrf.mxu0
  %v840 = vpop.f32.mrf.mxu0
  %v841 = vadd.f32 0.0, %v840
  %v842 = vpop.f32.mrf.mxu0
  %843 = vmatprep.mubr.bf16.mxu0 %v628
  %844 = vmatmul.mubr.bf16.gmra.mxu0 %v627
  %v845 = vpop.f32.mrf.mxu0
  %v846 = vadd.f32 0.0, %v845
  %v847 = vpop.f32.mrf.mxu0
  %v848 = vpop.f32.mrf.mxu0
  %v849 = vadd.f32 0.0, %v848
  %v850 = vpop.f32.mrf.mxu0
  %851 = vmatprep.mubr.bf16.mxu0 %v630
  %852 = vmatmul.mubr.bf16.gmra.mxu0 %v629
  %v853 = vpop.f32.mrf.mxu0
  %v854 = vadd.f32 0.0, %v853
  %v855 = vpop.f32.mrf.mxu0
  %v856 = vpop.f32.mrf.mxu0
  %v857 = vadd.f32 0.0, %v856
  %v858 = vpop.f32.mrf.mxu0
  %859 = vmatprep.mubr.bf16.mxu0 %v632
  %860 = vmatmul.mubr.bf16.gmra.mxu0 %v631
  %v861 = vpop.f32.mrf.mxu0
  %v862 = vadd.f32 0.0, %v861
  %v863 = vpop.f32.mrf.mxu0
  %v864 = vpop.f32.mrf.mxu0
  %v865 = vadd.f32 0.0, %v864
  %v866 = vpop.f32.mrf.mxu0
  %867 = vmatprep.mubr.bf16.mxu0 %v634
  %868 = vmatmul.mubr.bf16.gmra.mxu0 %v633
  %v869 = vpop.f32.mrf.mxu0
  %v870 = vadd.f32 0.0, %v869
  %v871 = vpop.f32.mrf.mxu0
  %v872 = vpop.f32.mrf.mxu0
  %v873 = vadd.f32 0.0, %v872
  %v874 = vpop.f32.mrf.mxu0
  %875 = vmatprep.mubr.bf16.mxu0 %v636
  %876 = vmatmul.mubr.bf16.gmra.mxu0 %v635
  %v877 = vpop.f32.mrf.mxu0
  %v878 = vadd.f32 0.0, %v877
  %v879 = vpop.f32.mrf.mxu0
  %v880 = vpop.f32.mrf.mxu0
  %v881 = vadd.f32 0.0, %v880
  %v882 = vpop.f32.mrf.mxu0
  %883 = vmatprep.mubr.bf16.mxu0 %v638
  %884 = vmatmul.mubr.bf16.gmra.mxu0 %v637
  %v885 = vpop.f32.mrf.mxu0
  %v886 = vadd.f32 0.0, %v885
  %v887 = vpop.f32.mrf.mxu0
  %v888 = vpop.f32.mrf.mxu0
  %v889 = vadd.f32 0.0, %v888
  %v890 = vpop.f32.mrf.mxu0
  %891 = vmatprep.mubr.bf16.mxu0 %v640
  %892 = vmatmul.mubr.bf16.gmra.mxu0 %v639
  %v893 = vpop.f32.mrf.mxu0
  %v894 = vadd.f32 0.0, %v893
  %v895 = vpop.f32.mrf.mxu0
  %v896 = vpop.f32.mrf.mxu0
  %v897 = vadd.f32 0.0, %v896
  %v898 = vpop.f32.mrf.mxu0
  %899 = vmatprep.mubr.bf16.mxu0 %v642
  %900 = vmatmul.mubr.bf16.gmra.mxu0 %v641
  %v901 = vpop.f32.mrf.mxu0
  %v902 = vadd.f32 0.0, %v901
  %v903 = vpop.f32.mrf.mxu0
  %v904 = vpop.f32.mrf.mxu0
  %v905 = vadd.f32 0.0, %v904
  %v906 = vpop.f32.mrf.mxu0
  %907 = vmatprep.mubr.bf16.mxu0 %v644
  %908 = vmatmul.mubr.bf16.gmra.mxu0 %v643
  %v909 = vpop.f32.mrf.mxu0
  %v910 = vadd.f32 0.0, %v909
  %v911 = vpop.f32.mrf.mxu0
  %v912 = vpop.f32.mrf.mxu0
  %v913 = vadd.f32 0.0, %v912
  %v914 = vpop.f32.mrf.mxu0
  %915 = vmatprep.mubr.bf16.mxu0 %v646
  %916 = vmatmul.mubr.bf16.gmra.mxu0 %v645
  %v917 = vpop.f32.mrf.mxu0
  %v918 = vadd.f32 0.0, %v917
  %v919 = vpop.f32.mrf.mxu0
  %v920 = vpop.f32.mrf.mxu0
  %v921 = vadd.f32 0.0, %v920
  %v922 = vpop.f32.mrf.mxu0
  %923 = vmatprep.mubr.bf16.mxu0 %v648
  %924 = vmatmul.mubr.bf16.gmra.mxu0 %v647
  %v925 = vpop.f32.mrf.mxu0
  %v926 = vadd.f32 0.0, %v925
  %v927 = vpop.f32.mrf.mxu0
  %v928 = vpop.f32.mrf.mxu0
  %v929 = vadd.f32 0.0, %v928
  %v930 = vpop.f32.mrf.mxu0
  %931 = vmatprep.mubr.bf16.mxu0 %v650
  %932 = vmatmul.mubr.bf16.gmra.mxu0 %v649
  %v933 = vpop.f32.mrf.mxu0
  %v934 = vadd.f32 0.0, %v933
  %v935 = vpop.f32.mrf.mxu0
  %v936 = vpop.f32.mrf.mxu0
  %v937 = vadd.f32 0.0, %v936
  %v938 = vpop.f32.mrf.mxu0
  %939 = vdwg.mxu0
  %v940 = vadd.f32 %v459, %v814
  %v941 = vadd.f32 %v460, %v817
  %v942 = vadd.f32 %v461, %v822
  %v943 = vadd.f32 %v462, %v825
  %v944 = vadd.f32 %v463, %v830
  %v945 = vadd.f32 %v464, %v833
  %v946 = vadd.f32 %v465, %v838
  %v947 = vadd.f32 %v466, %v841
  %v948 = vadd.f32 %v467, %v846
  %v949 = vadd.f32 %v468, %v849
  %v950 = vadd.f32 %v469, %v854
  %v951 = vadd.f32 %v470, %v857
  %v952 = vadd.f32 %v471, %v862
  %v953 = vadd.f32 %v472, %v865
  %v954 = vadd.f32 %v473, %v870
  %v955 = vadd.f32 %v474, %v873
  %v956 = vadd.f32 %v475, %v878
  %v957 = vadd.f32 %v476, %v881
  %v958 = vadd.f32 %v477, %v886
  %v959 = vadd.f32 %v478, %v889
  %v960 = vadd.f32 %v479, %v894
  %v961 = vadd.f32 %v480, %v897
  %v962 = vadd.f32 %v481, %v902
  %v963 = vadd.f32 %v482, %v905
  %v964 = vadd.f32 %v483, %v910
  %v965 = vadd.f32 %v484, %v913
  %v966 = vadd.f32 %v485, %v918
  %v967 = vadd.f32 %v486, %v921
  %v968 = vadd.f32 %v487, %v926
  %v969 = vadd.f32 %v488, %v929
  %v970 = vadd.f32 %v489, %v934
  %v971 = vadd.f32 %v490, %v937
  %972 = vst [vmem:[%s5] sm:$0xff] %v940
  %973 = vst [vmem:[%s5 + $0x8] sm:$0xff] %v941
  %974 = vst [vmem:[%s5 + $0x10] sm:$0xff] %v942
  %975 = vst [vmem:[%s5 + $0x18] sm:$0xff] %v943
  %976 = vst [vmem:[%s5 + $0x20] sm:$0xff] %v944
  %977 = vst [vmem:[%s5 + $0x28] sm:$0xff] %v945
  %978 = vst [vmem:[%s5 + $0x30] sm:$0xff] %v946
  %979 = vst [vmem:[%s5 + $0x38] sm:$0xff] %v947
  %980 = vst [vmem:[%s5 + $0x40] sm:$0xff] %v948
  %981 = vst [vmem:[%s5 + $0x48] sm:$0xff] %v949
  %982 = vst [vmem:[%s5 + $0x50] sm:$0xff] %v950
  %983 = vst [vmem:[%s5 + $0x58] sm:$0xff] %v951
  %984 = vst [vmem:[%s5 + $0x60] sm:$0xff] %v952
  %985 = vst [vmem:[%s5 + $0x68] sm:$0xff] %v953
  %986 = vst [vmem:[%s5 + $0x70] sm:$0xff] %v954
  %987 = vst [vmem:[%s5 + $0x78] sm:$0xff] %v955
  %988 = vst [vmem:[%s5 + $0x80] sm:$0xff] %v956
  %989 = vst [vmem:[%s5 + $0x88] sm:$0xff] %v957
  %990 = vst [vmem:[%s5 + $0x90] sm:$0xff] %v958
  %991 = vst [vmem:[%s5 + $0x98] sm:$0xff] %v959
  %992 = vst [vmem:[%s5 + $0xa0] sm:$0xff] %v960
  %993 = vst [vmem:[%s5 + $0xa8] sm:$0xff] %v961
  %994 = vst [vmem:[%s5 + $0xb0] sm:$0xff] %v962
  %995 = vst [vmem:[%s5 + $0xb8] sm:$0xff] %v963
  %996 = vst [vmem:[%s5 + $0xc0] sm:$0xff] %v964
  %997 = vst [vmem:[%s5 + $0xc8] sm:$0xff] %v965
  %998 = vst [vmem:[%s5 + $0xd0] sm:$0xff] %v966
  %999 = vst [vmem:[%s5 + $0xd8] sm:$0xff] %v967
  %1000 = vst [vmem:[%s5 + $0xe0] sm:$0xff] %v968
  %1001 = vst [vmem:[%s5 + $0xe8] sm:$0xff] %v969
  %1002 = vst [vmem:[%s5 + $0xf0] sm:$0xff] %v970
  %1003 = vst [vmem:[%s5 + $0xf8] sm:$0xff] %v971
  // Predicated region
  $region26: #{sun_layer_forward.1} parent=0 // pred_check
    _
  $region27: #{sun_layer_forward.1} parent=0 // pred_check_branch
    %1005 = sbr.rel (0) target = $region29
  $region28: #{sun_layer_forward.1} parent=0 // pred_region
    _
  $region29: #{sun_layer_forward.1} parent=0 // pred_fallthru
    _
  // Predicated region
  $region30: #{sun_layer_forward.1} parent=0 // pred_check
    _
  $region31: #{sun_layer_forward.1} parent=0 // pred_check_branch
    %1007 = sbr.rel (0) target = $region33
  $region32: #{sun_layer_forward.1} parent=0 // pred_region
    _
  $region33: #{sun_layer_forward.1} parent=0 // pred_fallthru
    _

</llo_original>
